<compile_context>
chip_gen: v7x
topology: tpu7x:2x2x1
jax: 0.10.0
libtpu: 0.0.40
codegen_flags: <defaults>
</compile_context>

<pallas_src>
import functools

import jax
import jax.numpy as jnp
from jax.experimental import pallas as pl
from jax.experimental.pallas import tpu as pltpu

NEG_INF = -1e9


# ------------------------- fused per-layer kernel --------------------------

def _decoder_kernel(x_emb_ref, enc_ref, bias_ref, seg_ref, segt_ref,
                    w_qkv_ref, w_o_ref, w_cq_ref, w_ckv_ref, w_co_ref,
                    w1_ref, w2_ref, ln_g_ref, ln_b_ref, lnf_g_ref, lnf_b_ref,
                    h_out_ref, self_kv_ref, cross_kv_ref,
                    x_scr,
                    *, B, Te, H, dh, eps):
    """One grid step == one decoder layer (Td == 1); last step also does final LN."""
    l = pl.program_id(0)
    D = H * dh
    scale = dh ** -0.5
    bf16 = jnp.bfloat16

    @pl.when(l == 0)
    def _init():
        x_scr[...] = x_emb_ref[...]

    def layer_norm(v, g, b):
        mean = jnp.mean(v, axis=-1, keepdims=True)
        var = jnp.mean(jnp.square(v - mean), axis=-1, keepdims=True)
        return (v - mean) * jax.lax.rsqrt(var + eps) * g + b

    def matmul(a, w):  # a: f32/bf16 [M,K], w: bf16 [K,N] -> f32 [M,N] on MXU
        return jnp.dot(a.astype(bf16), w, preferred_element_type=jnp.float32)

    x = x_scr[...]                      # [B, D]   f32 decoder state (VMEM resident)
    enc = enc_ref[...]                  # [B*Te,D] bf16 encoder hidden states
    g_all = ln_g_ref[...]               # [3, D]
    b_all = ln_b_ref[...]               # [3, D]

    # --------- masked self-attention (Td == 1: softmax == 1, output == V) ---------
    h1 = layer_norm(x, g_all[0:1, :], b_all[0:1, :])
    qkv = matmul(h1, w_qkv_ref[...])                    # [B, 3D] f32
    self_kv_ref[0] = qkv[:, D:3 * D].astype(bf16)       # emit K|V for the cache
    x = x + matmul(qkv[:, 2 * D:3 * D], w_o_ref[...])   # attn out == V

    # --------- cross-attention over encoder: all batches & heads at once ---------
    h2 = layer_norm(x, g_all[1:2, :], b_all[1:2, :])
    qc = matmul(h2, w_cq_ref[...])                      # [B, D]    f32
    kv_c = matmul(enc, w_ckv_ref[...])                  # [B*Te,2D] f32
    cross_kv_ref[0] = kv_c.astype(bf16)                 # emit cross K|V for the cache

    k_c = kv_c[:, :D]                                   # [B*Te, D]
    v_c = kv_c[:, D:2 * D]                              # [B*Te, D]
    # per-head scores via segment matrix: s[b*Te+k, h] = q_h . k_h
    prod = (qc.reshape(B, 1, D) * k_c.reshape(B, Te, D)).reshape(B * Te, D)
    s = jnp.dot(prod, seg_ref[...], preferred_element_type=jnp.float32) * scale
    s = s + bias_ref[...]                               # encoder padding bias [B*Te,1]
    s3 = s.reshape(B, Te, H)
    m = jnp.max(s3, axis=1, keepdims=True)              # softmax over key axis
    p = jnp.exp(s3 - m)
    denom = jnp.sum(p, axis=1, keepdims=True)
    p = (p * pl.reciprocal(denom, approx=True)).reshape(B * Te, H)
    # broadcast per-head probs back to D lanes and contract over keys
    p_wide = jnp.dot(p, segt_ref[...], preferred_element_type=jnp.float32)  # [B*Te,D]
    o = jnp.sum((p_wide * v_c).reshape(B, Te, D), axis=1)                   # [B, D]
    x = x + matmul(o, w_co_ref[...])

    # ------------------------------ feed-forward ------------------------------
    h3 = layer_norm(x, g_all[2:3, :], b_all[2:3, :])
    ff = jnp.maximum(matmul(h3, w1_ref[...]), 0.0)
    x = x + matmul(ff, w2_ref[...])
    x_scr[...] = x

    # --------------------- final LN (last layer only) -------------------------
    @pl.when(l == pl.num_programs(0) - 1)
    def _final():
        hf = layer_norm(x, lnf_g_ref[...], lnf_b_ref[...])
        h_out_ref[...] = hf.astype(bf16)


# --------------------------- vocab-tiled lm_head ----------------------------

def _lm_head_kernel(h_ref, lm_ref, out_ref):
    out_ref[...] = jnp.dot(h_ref[...], lm_ref[...],
                           preferred_element_type=jnp.float32)


# ----------------------------- parameter init -------------------------------

def init_params(key, *, vocab, d_model, n_heads, d_ff, n_layers):
    D, F, V, L = d_model, d_ff, vocab, n_layers
    Vp = ((V + 127) // 128) * 128          # lane-dense lm_head / logits padding
    keys = jax.random.split(key, 2 + 10 * L)
    it = iter(keys)

    def dense(shape):
        return jax.random.normal(next(it), shape, jnp.float32) * (shape[0] ** -0.5)

    embed = jax.random.normal(next(it), (V, D), jnp.float32) * 0.02

    w_qkv, w_o, w_cq, w_ckv, w_co, w1, w2 = [], [], [], [], [], [], []
    for _ in range(L):
        q, k, v, o = dense((D, D)), dense((D, D)), dense((D, D)), dense((D, D))
        cq, ck, cv, co = dense((D, D)), dense((D, D)), dense((D, D)), dense((D, D))
        f1, f2 = dense((D, F)), dense((F, D))
        w_qkv.append(jnp.concatenate([q, k, v], axis=1))     # fused QKV  [D, 3D]
        w_ckv.append(jnp.concatenate([ck, cv], axis=1))      # fused c-KV [D, 2D]
        w_o.append(o); w_cq.append(cq); w_co.append(co)
        w1.append(f1); w2.append(f2)

    lm = jnp.pad(dense((D, V)), ((0, 0), (0, Vp - V)))       # pad vocab -> 128-mult

    bf = jnp.bfloat16
    return {
        "vocab": V, "n_heads": n_heads,
        "embed": embed,                                      # f32 (gathered in glue)
        "w_qkv": jnp.stack(w_qkv).astype(bf),                # [L, D, 3D]
        "w_o":   jnp.stack(w_o).astype(bf),                  # [L, D, D]
        "w_cq":  jnp.stack(w_cq).astype(bf),                 # [L, D, D]
        "w_ckv": jnp.stack(w_ckv).astype(bf),                # [L, D, 2D]
        "w_co":  jnp.stack(w_co).astype(bf),                 # [L, D, D]
        "w1":    jnp.stack(w1).astype(bf),                   # [L, D, F]
        "w2":    jnp.stack(w2).astype(bf),                   # [L, F, D]
        "ln_g":  jnp.ones((L, 3, D), jnp.float32),           # LN1/LN2/LN3 gains
        "ln_b":  jnp.zeros((L, 3, D), jnp.float32),
        "lnf_g": jnp.ones((1, D), jnp.float32),
        "lnf_b": jnp.zeros((1, D), jnp.float32),
        "lm_head": lm.astype(bf),                            # [D, Vp]
    }


# ------------------------------ forward pass --------------------------------

def decoder_first_forward(params, decoder_input_ids, hidden_states,
                          encoder_attention_mask):
    """First decode step (no past). Returns (logits, past_key_values)."""
    B, Td = decoder_input_ids.shape
    _, Te, D = hidden_states.shape
    H = params["n_heads"]
    dh = D // H
    V = params["vocab"]
    Vp = params["lm_head"].shape[1]
    L = params["w_qkv"].shape[0]
    F = params["w1"].shape[2]
    assert Td == 1, "export_decoder_first is the Td==1 first decode step"

    # glue: embedding gather + flatten; layer-invariant bias / head-segment mats
    x_emb = params["embed"][decoder_input_ids].reshape(B * Td, D)            # f32
    enc = hidden_states.astype(jnp.bfloat16).reshape(B * Te, D)              # bf16
    enc_bias = jnp.where(encoder_attention_mask.reshape(B * Te, 1) > 0,
                         0.0, NEG_INF).astype(jnp.float32)                   # [B*Te,1]
    head_of_lane = jnp.arange(D, dtype=jnp.int32) // dh
    seg = (head_of_lane[:, None] ==
           jnp.arange(H, dtype=jnp.int32)[None, :]).astype(jnp.float32)      # [D, H]
    seg_t = seg.T                                                            # [H, D]

    kernel = functools.partial(_decoder_kernel, B=B, Te=Te, H=H, dh=dh, eps=1e-6)

    grid_spec = pltpu.PrefetchScalarGridSpec(
        num_scalar_prefetch=0,
        grid=(L,),
        in_specs=[
            pl.BlockSpec((B * Td, D), lambda l: (0, 0)),             # x_emb (resident)
            pl.BlockSpec((B * Te, D), lambda l: (0, 0)),             # enc   (resident)
            pl.BlockSpec((B * Te, 1), lambda l: (0, 0)),             # enc padding bias
            pl.BlockSpec((D, H), lambda l: (0, 0)),                  # head segment mat
            pl.BlockSpec((H, D), lambda l: (0, 0)),                  # its transpose
            pl.BlockSpec((None, D, 3 * D), lambda l: (l, 0, 0)),     # w_qkv[l]
            pl.BlockSpec((None, D, D), lambda l: (l, 0, 0)),         # w_o[l]
            pl.BlockSpec((None, D, D), lambda l: (l, 0, 0)),         # w_cq[l]
            pl.BlockSpec((None, D, 2 * D), lambda l: (l, 0, 0)),     # w_ckv[l]
            pl.BlockSpec((None, D, D), lambda l: (l, 0, 0)),         # w_co[l]
            pl.BlockSpec((None, D, F), lambda l: (l, 0, 0)),         # w1[l]
            pl.BlockSpec((None, F, D), lambda l: (l, 0, 0)),         # w2[l]
            pl.BlockSpec((None, 3, D), lambda l: (l, 0, 0)),         # ln gains[l]
            pl.BlockSpec((None, 3, D), lambda l: (l, 0, 0)),         # ln biases[l]
            pl.BlockSpec((1, D), lambda l: (0, 0)),                  # final LN gain
            pl.BlockSpec((1, D), lambda l: (0, 0)),                  # final LN bias
        ],
        out_specs=[
            pl.BlockSpec((B * Td, D), lambda l: (0, 0)),             # final hidden (bf16)
            pl.BlockSpec((1, B * Td, 2 * D), lambda l: (l, 0, 0)),   # self  K|V per layer
            pl.BlockSpec((1, B * Te, 2 * D), lambda l: (l, 0, 0)),   # cross K|V per layer
        ],
        scratch_shapes=[
            pltpu.VMEM((B * Td, D), jnp.float32),   # decoder state carried over layers
        ],
    )

    h_final, self_kv, cross_kv = pl.pallas_call(
        kernel,
        grid_spec=grid_spec,
        out_shape=(
            jax.ShapeDtypeStruct((B * Td, D), jnp.bfloat16),
            jax.ShapeDtypeStruct((L, B * Td, 2 * D), jnp.bfloat16),
            jax.ShapeDtypeStruct((L, B * Te, 2 * D), jnp.bfloat16),
        ),
        compiler_params=pltpu.CompilerParams(
            dimension_semantics=("arbitrary",),      # layer axis carries state
        ),
    )(x_emb, enc, enc_bias, seg, seg_t,
      params["w_qkv"], params["w_o"], params["w_cq"], params["w_ckv"],
      params["w_co"], params["w1"], params["w2"],
      params["ln_g"], params["ln_b"], params["lnf_g"], params["lnf_b"])

    # lm_head: separate pallas_call tiled over the (padded) vocab axis so the
    # [D, Vp] weight never sits resident in the layer loop and the vocab tiles
    # can be split across TensorCores on v7x.
    TN = 512 if Vp % 512 == 0 else (256 if Vp % 256 == 0 else 128)
    logits_p = pl.pallas_call(
        _lm_head_kernel,
        out_shape=jax.ShapeDtypeStruct((B * Td, Vp), jnp.float32),
        grid_spec=pltpu.PrefetchScalarGridSpec(
            num_scalar_prefetch=0,
            grid=(Vp // TN,),
            in_specs=[
                pl.BlockSpec((B * Td, D), lambda j: (0, 0)),
                pl.BlockSpec((D, TN), lambda j: (0, j)),
            ],
            out_specs=pl.BlockSpec((B * Td, TN), lambda j: (0, j)),
        ),
        compiler_params=pltpu.CompilerParams(
            dimension_semantics=("parallel",),
        ),
    )(h_final, params["lm_head"])

    logits = logits_p[:, :V].reshape(B, Td, V)

    # glue: split the lane-contiguous bf16 K|V caches into (B, H, T, dh) tuples
    past_key_values = []
    for l in range(L):
        skv = self_kv[l]    # [B*Td, 2D] bf16
        ckv = cross_kv[l]   # [B*Te, 2D] bf16
        sk = skv[:, :D].reshape(B, Td, H, dh).transpose(0, 2, 1, 3)
        sv = skv[:, D:].reshape(B, Td, H, dh).transpose(0, 2, 1, 3)
        ck = ckv[:, :D].reshape(B, Te, H, dh).transpose(0, 2, 1, 3)
        cv = ckv[:, D:].reshape(B, Te, H, dh).transpose(0, 2, 1, 3)
        past_key_values.append((sk, sv, ck, cv))
    return logits, tuple(past_key_values)


# ---------------------------------- main ------------------------------------

if __name__ == "__main__":
    B, Td, Te = 2, 1, 8          # first decode step: decoder length 1
    D, H, F, V, L = 32, 4, 64, 96, 2

    key = jax.random.PRNGKey(0)
    k_params, k_ids, k_hidden = jax.random.split(key, 3)

    params = init_params(k_params, vocab=V, d_model=D, n_heads=H,
                         d_ff=F, n_layers=L)

    decoder_input_ids = jax.random.randint(k_ids, (B, Td), 0, V, dtype=jnp.int32)
    hidden_states = jax.random.normal(k_hidden, (B, Te, D), jnp.float32)
    encoder_attention_mask = jnp.concatenate(
        [jnp.ones((B, 6), jnp.int32), jnp.zeros((B, 2), jnp.int32)], axis=1)

    logits, past_key_values = decoder_first_forward(
        params, decoder_input_ids, hidden_states, encoder_attention_mask)
    jax.block_until_ready((logits, past_key_values))

    assert logits.shape == (B, Td, V)
    assert len(past_key_values) == L
    assert past_key_values[0][0].shape == (B, H, Td, D // H)   # self k
    assert past_key_values[0][2].shape == (B, H, Te, D // H)   # cross k
    assert bool(jnp.all(jnp.isfinite(logits)))
    print("KERNEL_OK")
</pallas_src>

<mosaic_0001>
module attributes {stable_mosaic.version = 11 : i64} {
  func.func @_decoder_kernel(%arg0: i32, %arg1: memref<2x32xf32, #tpu.memory_space<vmem>>, %arg2: memref<16x32xbf16, #tpu.memory_space<vmem>>, %arg3: memref<16x1xf32, #tpu.memory_space<vmem>>, %arg4: memref<32x4xf32, #tpu.memory_space<vmem>>, %arg5: memref<4x32xf32, #tpu.memory_space<vmem>>, %arg6: memref<1x32x96xbf16, #tpu.memory_space<vmem>>, %arg7: memref<1x32x32xbf16, #tpu.memory_space<vmem>>, %arg8: memref<1x32x32xbf16, #tpu.memory_space<vmem>>, %arg9: memref<1x32x64xbf16, #tpu.memory_space<vmem>>, %arg10: memref<1x32x32xbf16, #tpu.memory_space<vmem>>, %arg11: memref<1x32x64xbf16, #tpu.memory_space<vmem>>, %arg12: memref<1x64x32xbf16, #tpu.memory_space<vmem>>, %arg13: memref<1x3x32xf32, #tpu.memory_space<vmem>>, %arg14: memref<1x3x32xf32, #tpu.memory_space<vmem>>, %arg15: memref<1x32xf32, #tpu.memory_space<vmem>>, %arg16: memref<1x32xf32, #tpu.memory_space<vmem>>, %arg17: memref<2x32xbf16, #tpu.memory_space<vmem>>, %arg18: memref<1x2x64xbf16, #tpu.memory_space<vmem>>, %arg19: memref<1x16x64xbf16, #tpu.memory_space<vmem>>, %arg20: memref<2x32xf32, #tpu.memory_space<vmem>>) attributes {dimension_semantics = [#tpu.dimension_semantics<arbitrary>], iteration_bounds = array<i64: 2>, scalar_prefetch = 0 : i64, scratch_operands = 1 : i64, tpu.core_type = #tpu.core_type<tc>, window_params = [{pipeline_mode = #tpu.pipeline_mode<synchronous>, transform_indices = @transform_0, window_bounds = array<i64: 2, 32>}, {pipeline_mode = #tpu.pipeline_mode<synchronous>, transform_indices = @transform_1, window_bounds = array<i64: 16, 32>}, {pipeline_mode = #tpu.pipeline_mode<synchronous>, transform_indices = @transform_2, window_bounds = array<i64: 16, 1>}, {pipeline_mode = #tpu.pipeline_mode<synchronous>, transform_indices = @transform_3, window_bounds = array<i64: 32, 4>}, {pipeline_mode = #tpu.pipeline_mode<synchronous>, transform_indices = @transform_4, window_bounds = array<i64: 4, 32>}, {transform_indices = @transform_5, window_bounds = array<i64: 1, 32, 96>}, {transform_indices = @transform_6, window_bounds = array<i64: 1, 32, 32>}, {transform_indices = @transform_7, window_bounds = array<i64: 1, 32, 32>}, {transform_indices = @transform_8, window_bounds = array<i64: 1, 32, 64>}, {transform_indices = @transform_9, window_bounds = array<i64: 1, 32, 32>}, {transform_indices = @transform_10, window_bounds = array<i64: 1, 32, 64>}, {transform_indices = @transform_11, window_bounds = array<i64: 1, 64, 32>}, {transform_indices = @transform_12, window_bounds = array<i64: 1, 3, 32>}, {transform_indices = @transform_13, window_bounds = array<i64: 1, 3, 32>}, {pipeline_mode = #tpu.pipeline_mode<synchronous>, transform_indices = @transform_14, window_bounds = array<i64: 1, 32>}, {pipeline_mode = #tpu.pipeline_mode<synchronous>, transform_indices = @transform_15, window_bounds = array<i64: 1, 32>}, {pipeline_mode = #tpu.pipeline_mode<synchronous>, transform_indices = @transform_16, window_bounds = array<i64: 2, 32>}, {transform_indices = @transform_17, window_bounds = array<i64: 1, 2, 64>}, {transform_indices = @transform_18, window_bounds = array<i64: 1, 16, 64>}]} {
    %c0_i32 = arith.constant 0 : i32
    %0 = arith.cmpi eq, %arg0, %c0_i32 : i32
    %1 = arith.extui %0 : i1 to i32
    %c0_i32_0 = arith.constant 0 : i32
    %2 = arith.cmpi ne, %1, %c0_i32_0 : i32
    scf.if %2 {
      %c0_74 = arith.constant 0 : index
      %c0_75 = arith.constant 0 : index
      %158 = vector.load %arg1[%c0_74, %c0_75] : memref<2x32xf32, #tpu.memory_space<vmem>>, vector<2x32xf32>
      %c0_76 = arith.constant 0 : index
      %c0_77 = arith.constant 0 : index
      %159 = vector.load %arg20[%c0_76, %c0_77] : memref<2x32xf32, #tpu.memory_space<vmem>>, vector<2x32xf32>
      tpu.vector_store %arg20[%c0_76, %c0_77], %158 {strides = array<i32>} : memref<2x32xf32, #tpu.memory_space<vmem>>, vector<2x32xf32>,
    } else {
    }
    %c0 = arith.constant 0 : index
    %c0_1 = arith.constant 0 : index
    %3 = vector.load %arg20[%c0, %c0_1] : memref<2x32xf32, #tpu.memory_space<vmem>>, vector<2x32xf32>
    %c0_2 = arith.constant 0 : index
    %c0_3 = arith.constant 0 : index
    %4 = vector.load %arg2[%c0_2, %c0_3] : memref<16x32xbf16, #tpu.memory_space<vmem>>, vector<16x32xbf16>
    %c0_4 = arith.constant 0 : index
    %c0_5 = arith.constant 0 : index
    %c0_6 = arith.constant 0 : index
    %5 = vector.load %arg13[%c0_4, %c0_5, %c0_6] : memref<1x3x32xf32, #tpu.memory_space<vmem>>, vector<1x3x32xf32>
    %6 = vector.shape_cast %5 : vector<1x3x32xf32> to vector<3x32xf32>
    %c0_7 = arith.constant 0 : index
    %c0_8 = arith.constant 0 : index
    %c0_9 = arith.constant 0 : index
    %7 = vector.load %arg14[%c0_7, %c0_8, %c0_9] : memref<1x3x32xf32, #tpu.memory_space<vmem>>, vector<1x3x32xf32>
    %8 = vector.shape_cast %7 : vector<1x3x32xf32> to vector<3x32xf32>
    %9 = vector.extract_strided_slice %6 {offsets = [0, 0], sizes = [1, 32], strides = [1, 1]} : vector<3x32xf32> to vector<1x32xf32>
    %10 = vector.extract_strided_slice %8 {offsets = [0, 0], sizes = [1, 32], strides = [1, 1]} : vector<3x32xf32> to vector<1x32xf32>
    %cst = arith.constant dense<0.000000e+00> : vector<2xf32>
    %11 = vector.multi_reduction <add>, %3, %cst [1] : vector<2x32xf32> to vector<2xf32>
    %12 = vector.shape_cast %11 : vector<2xf32> to vector<2x1xf32>
    %cst_10 = arith.constant 3.200000e+01 : f32
    %13 = vector.broadcast %cst_10 : f32 to vector<2x1xf32>
    %14 = arith.divf %12, %13 : vector<2x1xf32>
    %15 = vector.broadcast %14 : vector<2x1xf32> to vector<2x32xf32>
    %16 = arith.subf %3, %15 : vector<2x32xf32>
    %17 = arith.mulf %16, %16 : vector<2x32xf32>
    %cst_11 = arith.constant dense<0.000000e+00> : vector<2xf32>
    %18 = vector.multi_reduction <add>, %17, %cst_11 [1] : vector<2x32xf32> to vector<2xf32>
    %19 = vector.shape_cast %18 : vector<2xf32> to vector<2x1xf32>
    %cst_12 = arith.constant 3.200000e+01 : f32
    %20 = vector.broadcast %cst_12 : f32 to vector<2x1xf32>
    %21 = arith.divf %19, %20 : vector<2x1xf32>
    %22 = vector.broadcast %14 : vector<2x1xf32> to vector<2x32xf32>
    %23 = arith.subf %3, %22 : vector<2x32xf32>
    %cst_13 = arith.constant 9.99999997E-7 : f32
    %24 = vector.broadcast %cst_13 : f32 to vector<2x1xf32>
    %25 = arith.addf %21, %24 : vector<2x1xf32>
    %26 = math.rsqrt %25 : vector<2x1xf32>
    %27 = vector.broadcast %26 : vector<2x1xf32> to vector<2x32xf32>
    %28 = arith.mulf %23, %27 : vector<2x32xf32>
    %29 = vector.broadcast %9 : vector<1x32xf32> to vector<2x32xf32>
    %30 = arith.mulf %28, %29 : vector<2x32xf32>
    %31 = vector.broadcast %10 : vector<1x32xf32> to vector<2x32xf32>
    %32 = arith.addf %30, %31 : vector<2x32xf32>
    %c0_14 = arith.constant 0 : index
    %c0_15 = arith.constant 0 : index
    %c0_16 = arith.constant 0 : index
    %33 = vector.load %arg6[%c0_14, %c0_15, %c0_16] : memref<1x32x96xbf16, #tpu.memory_space<vmem>>, vector<1x32x96xbf16>
    %34 = vector.shape_cast %33 : vector<1x32x96xbf16> to vector<32x96xbf16>
    %35 = arith.truncf %32 : vector<2x32xf32> to vector<2x32xbf16>
    %cst_17 = arith.constant dense<0.000000e+00> : vector<2x96xf32>
    %36 = tpu.matmul %35, %34, %cst_17 {dimension_numbers = #tpu.dot_dimension_numbers<[1], [0], [0], [1], [0, 0, 1, 1], [], []>} : vector<2x32xbf16>, vector<32x96xbf16>, vector<2x96xf32> -> vector<2x96xf32>
    %37 = vector.extract_strided_slice %36 {offsets = [0, 32], sizes = [2, 64], strides = [1, 1]} : vector<2x96xf32> to vector<2x64xf32>
    %38 = arith.truncf %37 : vector<2x64xf32> to vector<2x64xbf16>
    %c0_18 = arith.constant 0 : index
    %c0_19 = arith.constant 0 : index
    %c0_20 = arith.constant 0 : index
    %39 = vector.load %arg18[%c0_18, %c0_19, %c0_20] : memref<1x2x64xbf16, #tpu.memory_space<vmem>>, vector<1x2x64xbf16>
    %40 = vector.shape_cast %39 : vector<1x2x64xbf16> to vector<2x64xbf16>
    %41 = vector.shape_cast %38 : vector<2x64xbf16> to vector<1x2x64xbf16>
    tpu.vector_store %arg18[%c0_18, %c0_19, %c0_20], %41 {strides = array<i32>} : memref<1x2x64xbf16, #tpu.memory_space<vmem>>, vector<1x2x64xbf16>,
    %42 = vector.extract_strided_slice %36 {offsets = [0, 64], sizes = [2, 32], strides = [1, 1]} : vector<2x96xf32> to vector<2x32xf32>
    %c0_21 = arith.constant 0 : index
    %c0_22 = arith.constant 0 : index
    %c0_23 = arith.constant 0 : index
    %43 = vector.load %arg7[%c0_21, %c0_22, %c0_23] : memref<1x32x32xbf16, #tpu.memory_space<vmem>>, vector<1x32x32xbf16>
    %44 = vector.shape_cast %43 : vector<1x32x32xbf16> to vector<32x32xbf16>
    %45 = arith.truncf %42 : vector<2x32xf32> to vector<2x32xbf16>
    %cst_24 = arith.constant dense<0.000000e+00> : vector<2x32xf32>
    %46 = tpu.matmul %45, %44, %cst_24 {dimension_numbers = #tpu.dot_dimension_numbers<[1], [0], [0], [1], [0, 0, 1, 1], [], []>} : vector<2x32xbf16>, vector<32x32xbf16>, vector<2x32xf32> -> vector<2x32xf32>
    %47 = arith.addf %3, %46 : vector<2x32xf32>
    %48 = vector.extract_strided_slice %6 {offsets = [1, 0], sizes = [1, 32], strides = [1, 1]} : vector<3x32xf32> to vector<1x32xf32>
    %49 = vector.extract_strided_slice %8 {offsets = [1, 0], sizes = [1, 32], strides = [1, 1]} : vector<3x32xf32> to vector<1x32xf32>
    %cst_25 = arith.constant dense<0.000000e+00> : vector<2xf32>
    %50 = vector.multi_reduction <add>, %47, %cst_25 [1] : vector<2x32xf32> to vector<2xf32>
    %51 = vector.shape_cast %50 : vector<2xf32> to vector<2x1xf32>
    %cst_26 = arith.constant 3.200000e+01 : f32
    %52 = vector.broadcast %cst_26 : f32 to vector<2x1xf32>
    %53 = arith.divf %51, %52 : vector<2x1xf32>
    %54 = vector.broadcast %53 : vector<2x1xf32> to vector<2x32xf32>
    %55 = arith.subf %47, %54 : vector<2x32xf32>
    %56 = arith.mulf %55, %55 : vector<2x32xf32>
    %cst_27 = arith.constant dense<0.000000e+00> : vector<2xf32>
    %57 = vector.multi_reduction <add>, %56, %cst_27 [1] : vector<2x32xf32> to vector<2xf32>
    %58 = vector.shape_cast %57 : vector<2xf32> to vector<2x1xf32>
    %cst_28 = arith.constant 3.200000e+01 : f32
    %59 = vector.broadcast %cst_28 : f32 to vector<2x1xf32>
    %60 = arith.divf %58, %59 : vector<2x1xf32>
    %61 = vector.broadcast %53 : vector<2x1xf32> to vector<2x32xf32>
    %62 = arith.subf %47, %61 : vector<2x32xf32>
    %cst_29 = arith.constant 9.99999997E-7 : f32
    %63 = vector.broadcast %cst_29 : f32 to vector<2x1xf32>
    %64 = arith.addf %60, %63 : vector<2x1xf32>
    %65 = math.rsqrt %64 : vector<2x1xf32>
    %66 = vector.broadcast %65 : vector<2x1xf32> to vector<2x32xf32>
    %67 = arith.mulf %62, %66 : vector<2x32xf32>
    %68 = vector.broadcast %48 : vector<1x32xf32> to vector<2x32xf32>
    %69 = arith.mulf %67, %68 : vector<2x32xf32>
    %70 = vector.broadcast %49 : vector<1x32xf32> to vector<2x32xf32>
    %71 = arith.addf %69, %70 : vector<2x32xf32>
    %c0_30 = arith.constant 0 : index
    %c0_31 = arith.constant 0 : index
    %c0_32 = arith.constant 0 : index
    %72 = vector.load %arg8[%c0_30, %c0_31, %c0_32] : memref<1x32x32xbf16, #tpu.memory_space<vmem>>, vector<1x32x32xbf16>
    %73 = vector.shape_cast %72 : vector<1x32x32xbf16> to vector<32x32xbf16>
    %74 = arith.truncf %71 : vector<2x32xf32> to vector<2x32xbf16>
    %cst_33 = arith.constant dense<0.000000e+00> : vector<2x32xf32>
    %75 = tpu.matmul %74, %73, %cst_33 {dimension_numbers = #tpu.dot_dimension_numbers<[1], [0], [0], [1], [0, 0, 1, 1], [], []>} : vector<2x32xbf16>, vector<32x32xbf16>, vector<2x32xf32> -> vector<2x32xf32>
    %c0_34 = arith.constant 0 : index
    %c0_35 = arith.constant 0 : index
    %c0_36 = arith.constant 0 : index
    %76 = vector.load %arg9[%c0_34, %c0_35, %c0_36] : memref<1x32x64xbf16, #tpu.memory_space<vmem>>, vector<1x32x64xbf16>
    %77 = vector.shape_cast %76 : vector<1x32x64xbf16> to vector<32x64xbf16>
    %cst_37 = arith.constant dense<0.000000e+00> : vector<16x64xf32>
    %78 = tpu.matmul %4, %77, %cst_37 {dimension_numbers = #tpu.dot_dimension_numbers<[1], [0], [0], [1], [0, 0, 1, 1], [], []>} : vector<16x32xbf16>, vector<32x64xbf16>, vector<16x64xf32> -> vector<16x64xf32>
    %79 = arith.truncf %78 : vector<16x64xf32> to vector<16x64xbf16>
    %c0_38 = arith.constant 0 : index
    %c0_39 = arith.constant 0 : index
    %c0_40 = arith.constant 0 : index
    %80 = vector.load %arg19[%c0_38, %c0_39, %c0_40] : memref<1x16x64xbf16, #tpu.memory_space<vmem>>, vector<1x16x64xbf16>
    %81 = vector.shape_cast %80 : vector<1x16x64xbf16> to vector<16x64xbf16>
    %82 = vector.shape_cast %79 : vector<16x64xbf16> to vector<1x16x64xbf16>
    tpu.vector_store %arg19[%c0_38, %c0_39, %c0_40], %82 {strides = array<i32>} : memref<1x16x64xbf16, #tpu.memory_space<vmem>>, vector<1x16x64xbf16>,
    %83 = vector.extract_strided_slice %78 {offsets = [0, 0], sizes = [16, 32], strides = [1, 1]} : vector<16x64xf32> to vector<16x32xf32>
    %84 = vector.extract_strided_slice %78 {offsets = [0, 32], sizes = [16, 32], strides = [1, 1]} : vector<16x64xf32> to vector<16x32xf32>
    %85 = vector.shape_cast %75 : vector<2x32xf32> to vector<2x1x32xf32>
    %86 = vector.shape_cast %83 : vector<16x32xf32> to vector<2x8x32xf32>
    %87 = vector.broadcast %85 : vector<2x1x32xf32> to vector<2x8x32xf32>
    %88 = arith.mulf %87, %86 : vector<2x8x32xf32>
    %89 = vector.shape_cast %88 : vector<2x8x32xf32> to vector<16x32xf32>
    %c0_41 = arith.constant 0 : index
    %c0_42 = arith.constant 0 : index
    %90 = vector.load %arg4[%c0_41, %c0_42] : memref<32x4xf32, #tpu.memory_space<vmem>>, vector<32x4xf32>
    %cst_43 = arith.constant dense<0.000000e+00> : vector<16x4xf32>
    %91 = tpu.matmul %89, %90, %cst_43 {dimension_numbers = #tpu.dot_dimension_numbers<[1], [0], [0], [1], [0, 0, 1, 1], [], []>} : vector<16x32xf32>, vector<32x4xf32>, vector<16x4xf32> -> vector<16x4xf32>
    %cst_44 = arith.constant 0.353553385 : f32
    %92 = vector.broadcast %cst_44 : f32 to vector<16x4xf32>
    %93 = arith.mulf %91, %92 : vector<16x4xf32>
    %c0_45 = arith.constant 0 : index
    %c0_46 = arith.constant 0 : index
    %94 = vector.load %arg3[%c0_45, %c0_46] : memref<16x1xf32, #tpu.memory_space<vmem>>, vector<16x1xf32>
    %95 = vector.broadcast %94 : vector<16x1xf32> to vector<16x4xf32>
    %96 = arith.addf %93, %95 : vector<16x4xf32>
    %97 = vector.shape_cast %96 : vector<16x4xf32> to vector<2x8x4xf32>
    %cst_47 = arith.constant dense<0xFF800000> : vector<2x4xf32>
    %98 = vector.multi_reduction <maximumf>, %97, %cst_47 [1] : vector<2x8x4xf32> to vector<2x4xf32>
    %99 = vector.shape_cast %98 : vector<2x4xf32> to vector<2x1x4xf32>
    %100 = vector.broadcast %99 : vector<2x1x4xf32> to vector<2x8x4xf32>
    %101 = arith.subf %97, %100 : vector<2x8x4xf32>
    %102 = math.exp %101 : vector<2x8x4xf32>
    %cst_48 = arith.constant dense<0.000000e+00> : vector<2x4xf32>
    %103 = vector.multi_reduction <add>, %102, %cst_48 [1] : vector<2x8x4xf32> to vector<2x4xf32>
    %104 = vector.shape_cast %103 : vector<2x4xf32> to vector<2x1x4xf32>
    %105 = tpu.reciprocal %104 {approx = true} : vector<2x1x4xf32> -> vector<2x1x4xf32>
    %106 = vector.broadcast %105 : vector<2x1x4xf32> to vector<2x8x4xf32>
    %107 = arith.mulf %102, %106 : vector<2x8x4xf32>
    %108 = vector.shape_cast %107 : vector<2x8x4xf32> to vector<16x4xf32>
    %c0_49 = arith.constant 0 : index
    %c0_50 = arith.constant 0 : index
    %109 = vector.load %arg5[%c0_49, %c0_50] : memref<4x32xf32, #tpu.memory_space<vmem>>, vector<4x32xf32>
    %cst_51 = arith.constant dense<0.000000e+00> : vector<16x32xf32>
    %110 = tpu.matmul %108, %109, %cst_51 {dimension_numbers = #tpu.dot_dimension_numbers<[1], [0], [0], [1], [0, 0, 1, 1], [], []>} : vector<16x4xf32>, vector<4x32xf32>, vector<16x32xf32> -> vector<16x32xf32>
    %111 = arith.mulf %110, %84 : vector<16x32xf32>
    %112 = vector.shape_cast %111 : vector<16x32xf32> to vector<2x8x32xf32>
    %cst_52 = arith.constant dense<0.000000e+00> : vector<2x32xf32>
    %113 = vector.multi_reduction <add>, %112, %cst_52 [1] : vector<2x8x32xf32> to vector<2x32xf32>
    %c0_53 = arith.constant 0 : index
    %c0_54 = arith.constant 0 : index
    %c0_55 = arith.constant 0 : index
    %114 = vector.load %arg10[%c0_53, %c0_54, %c0_55] : memref<1x32x32xbf16, #tpu.memory_space<vmem>>, vector<1x32x32xbf16>
    %115 = vector.shape_cast %114 : vector<1x32x32xbf16> to vector<32x32xbf16>
    %116 = arith.truncf %113 : vector<2x32xf32> to vector<2x32xbf16>
    %cst_56 = arith.constant dense<0.000000e+00> : vector<2x32xf32>
    %117 = tpu.matmul %116, %115, %cst_56 {dimension_numbers = #tpu.dot_dimension_numbers<[1], [0], [0], [1], [0, 0, 1, 1], [], []>} : vector<2x32xbf16>, vector<32x32xbf16>, vector<2x32xf32> -> vector<2x32xf32>
    %118 = arith.addf %47, %117 : vector<2x32xf32>
    %119 = vector.extract_strided_slice %6 {offsets = [2, 0], sizes = [1, 32], strides = [1, 1]} : vector<3x32xf32> to vector<1x32xf32>
    %120 = vector.extract_strided_slice %8 {offsets = [2, 0], sizes = [1, 32], strides = [1, 1]} : vector<3x32xf32> to vector<1x32xf32>
    %cst_57 = arith.constant dense<0.000000e+00> : vector<2xf32>
    %121 = vector.multi_reduction <add>, %118, %cst_57 [1] : vector<2x32xf32> to vector<2xf32>
    %122 = vector.shape_cast %121 : vector<2xf32> to vector<2x1xf32>
    %cst_58 = arith.constant 3.200000e+01 : f32
    %123 = vector.broadcast %cst_58 : f32 to vector<2x1xf32>
    %124 = arith.divf %122, %123 : vector<2x1xf32>
    %125 = vector.broadcast %124 : vector<2x1xf32> to vector<2x32xf32>
    %126 = arith.subf %118, %125 : vector<2x32xf32>
    %127 = arith.mulf %126, %126 : vector<2x32xf32>
    %cst_59 = arith.constant dense<0.000000e+00> : vector<2xf32>
    %128 = vector.multi_reduction <add>, %127, %cst_59 [1] : vector<2x32xf32> to vector<2xf32>
    %129 = vector.shape_cast %128 : vector<2xf32> to vector<2x1xf32>
    %cst_60 = arith.constant 3.200000e+01 : f32
    %130 = vector.broadcast %cst_60 : f32 to vector<2x1xf32>
    %131 = arith.divf %129, %130 : vector<2x1xf32>
    %132 = vector.broadcast %124 : vector<2x1xf32> to vector<2x32xf32>
    %133 = arith.subf %118, %132 : vector<2x32xf32>
    %cst_61 = arith.constant 9.99999997E-7 : f32
    %134 = vector.broadcast %cst_61 : f32 to vector<2x1xf32>
    %135 = arith.addf %131, %134 : vector<2x1xf32>
    %136 = math.rsqrt %135 : vector<2x1xf32>
    %137 = vector.broadcast %136 : vector<2x1xf32> to vector<2x32xf32>
    %138 = arith.mulf %133, %137 : vector<2x32xf32>
    %139 = vector.broadcast %119 : vector<1x32xf32> to vector<2x32xf32>
    %140 = arith.mulf %138, %139 : vector<2x32xf32>
    %141 = vector.broadcast %120 : vector<1x32xf32> to vector<2x32xf32>
    %142 = arith.addf %140, %141 : vector<2x32xf32>
    %c0_62 = arith.constant 0 : index
    %c0_63 = arith.constant 0 : index
    %c0_64 = arith.constant 0 : index
    %143 = vector.load %arg11[%c0_62, %c0_63, %c0_64] : memref<1x32x64xbf16, #tpu.memory_space<vmem>>, vector<1x32x64xbf16>
    %144 = vector.shape_cast %143 : vector<1x32x64xbf16> to vector<32x64xbf16>
    %145 = arith.truncf %142 : vector<2x32xf32> to vector<2x32xbf16>
    %cst_65 = arith.constant dense<0.000000e+00> : vector<2x64xf32>
    %146 = tpu.matmul %145, %144, %cst_65 {dimension_numbers = #tpu.dot_dimension_numbers<[1], [0], [0], [1], [0, 0, 1, 1], [], []>} : vector<2x32xbf16>, vector<32x64xbf16>, vector<2x64xf32> -> vector<2x64xf32>
    %cst_66 = arith.constant 0.000000e+00 : f32
    %147 = vector.broadcast %cst_66 : f32 to vector<2x64xf32>
    %148 = arith.maximumf %146, %147 : vector<2x64xf32>
    %c0_67 = arith.constant 0 : index
    %c0_68 = arith.constant 0 : index
    %c0_69 = arith.constant 0 : index
    %149 = vector.load %arg12[%c0_67, %c0_68, %c0_69] : memref<1x64x32xbf16, #tpu.memory_space<vmem>>, vector<1x64x32xbf16>
    %150 = vector.shape_cast %149 : vector<1x64x32xbf16> to vector<64x32xbf16>
    %151 = arith.truncf %148 : vector<2x64xf32> to vector<2x64xbf16>
    %cst_70 = arith.constant dense<0.000000e+00> : vector<2x32xf32>
    %152 = tpu.matmul %151, %150, %cst_70 {dimension_numbers = #tpu.dot_dimension_numbers<[1], [0], [0], [1], [0, 0, 1, 1], [], []>} : vector<2x64xbf16>, vector<64x32xbf16>, vector<2x32xf32> -> vector<2x32xf32>
    %153 = arith.addf %118, %152 : vector<2x32xf32>
    %c0_71 = arith.constant 0 : index
    %c0_72 = arith.constant 0 : index
    %154 = vector.load %arg20[%c0_71, %c0_72] : memref<2x32xf32, #tpu.memory_space<vmem>>, vector<2x32xf32>
    tpu.vector_store %arg20[%c0_71, %c0_72], %153 {strides = array<i32>} : memref<2x32xf32, #tpu.memory_space<vmem>>, vector<2x32xf32>,
    %c1_i32 = arith.constant 1 : i32
    %155 = arith.cmpi eq, %arg0, %c1_i32 : i32
    %156 = arith.extui %155 : i1 to i32
    %c0_i32_73 = arith.constant 0 : i32
    %157 = arith.cmpi ne, %156, %c0_i32_73 : i32
    scf.if %157 {
      %c0_74 = arith.constant 0 : index
      %c0_75 = arith.constant 0 : index
      %158 = vector.load %arg15[%c0_74, %c0_75] : memref<1x32xf32, #tpu.memory_space<vmem>>, vector<1x32xf32>
      %c0_76 = arith.constant 0 : index
      %c0_77 = arith.constant 0 : index
      %159 = vector.load %arg16[%c0_76, %c0_77] : memref<1x32xf32, #tpu.memory_space<vmem>>, vector<1x32xf32>
      %cst_78 = arith.constant dense<0.000000e+00> : vector<2xf32>
      %160 = vector.multi_reduction <add>, %153, %cst_78 [1] : vector<2x32xf32> to vector<2xf32>
      %161 = vector.shape_cast %160 : vector<2xf32> to vector<2x1xf32>
      %cst_79 = arith.constant 3.200000e+01 : f32
      %162 = vector.broadcast %cst_79 : f32 to vector<2x1xf32>
      %163 = arith.divf %161, %162 : vector<2x1xf32>
      %164 = vector.broadcast %163 : vector<2x1xf32> to vector<2x32xf32>
      %165 = arith.subf %153, %164 : vector<2x32xf32>
      %166 = arith.mulf %165, %165 : vector<2x32xf32>
      %cst_80 = arith.constant dense<0.000000e+00> : vector<2xf32>
      %167 = vector.multi_reduction <add>, %166, %cst_80 [1] : vector<2x32xf32> to vector<2xf32>
      %168 = vector.shape_cast %167 : vector<2xf32> to vector<2x1xf32>
      %cst_81 = arith.constant 3.200000e+01 : f32
      %169 = vector.broadcast %cst_81 : f32 to vector<2x1xf32>
      %170 = arith.divf %168, %169 : vector<2x1xf32>
      %171 = vector.broadcast %163 : vector<2x1xf32> to vector<2x32xf32>
      %172 = arith.subf %153, %171 : vector<2x32xf32>
      %cst_82 = arith.constant 9.99999997E-7 : f32
      %173 = vector.broadcast %cst_82 : f32 to vector<2x1xf32>
      %174 = arith.addf %170, %173 : vector<2x1xf32>
      %175 = math.rsqrt %174 : vector<2x1xf32>
      %176 = vector.broadcast %175 : vector<2x1xf32> to vector<2x32xf32>
      %177 = arith.mulf %172, %176 : vector<2x32xf32>
      %178 = vector.broadcast %158 : vector<1x32xf32> to vector<2x32xf32>
      %179 = arith.mulf %177, %178 : vector<2x32xf32>
      %180 = vector.broadcast %159 : vector<1x32xf32> to vector<2x32xf32>
      %181 = arith.addf %179, %180 : vector<2x32xf32>
      %182 = arith.truncf %181 : vector<2x32xf32> to vector<2x32xbf16>
      %c0_83 = arith.constant 0 : index
      %c0_84 = arith.constant 0 : index
      %183 = vector.load %arg17[%c0_83, %c0_84] : memref<2x32xbf16, #tpu.memory_space<vmem>>, vector<2x32xbf16>
      tpu.vector_store %arg17[%c0_83, %c0_84], %182 {strides = array<i32>} : memref<2x32xbf16, #tpu.memory_space<vmem>>, vector<2x32xbf16>,
    } else {
    }
    return
  }
  func.func @transform_0(%arg0: i32) -> (i32, i32) {
    %c0_i32 = arith.constant 0 : i32
    %c0_i32_0 = arith.constant 0 : i32
    %c0_i32_1 = arith.constant 0 : i32
    return %c0_i32, %c0_i32_0 : i32, i32
  }
  func.func @transform_1(%arg0: i32) -> (i32, i32) {
    %c0_i32 = arith.constant 0 : i32
    %c0_i32_0 = arith.constant 0 : i32
    %c0_i32_1 = arith.constant 0 : i32
    return %c0_i32, %c0_i32_0 : i32, i32
  }
  func.func @transform_2(%arg0: i32) -> (i32, i32) {
    %c0_i32 = arith.constant 0 : i32
    %c0_i32_0 = arith.constant 0 : i32
    %c0_i32_1 = arith.constant 0 : i32
    return %c0_i32, %c0_i32_0 : i32, i32
  }
  func.func @transform_3(%arg0: i32) -> (i32, i32) {
    %c0_i32 = arith.constant 0 : i32
    %c0_i32_0 = arith.constant 0 : i32
    %c0_i32_1 = arith.constant 0 : i32
    return %c0_i32, %c0_i32_0 : i32, i32
  }
  func.func @transform_4(%arg0: i32) -> (i32, i32) {
    %c0_i32 = arith.constant 0 : i32
    %c0_i32_0 = arith.constant 0 : i32
    %c0_i32_1 = arith.constant 0 : i32
    return %c0_i32, %c0_i32_0 : i32, i32
  }
  func.func @transform_5(%arg0: i32) -> (i32, i32, i32) {
    %c0_i32 = arith.constant 0 : i32
    %c0_i32_0 = arith.constant 0 : i32
    %c0_i32_1 = arith.constant 0 : i32
    return %arg0, %c0_i32, %c0_i32_0 : i32, i32, i32
  }
  func.func @transform_6(%arg0: i32) -> (i32, i32, i32) {
    %c0_i32 = arith.constant 0 : i32
    %c0_i32_0 = arith.constant 0 : i32
    %c0_i32_1 = arith.constant 0 : i32
    return %arg0, %c0_i32, %c0_i32_0 : i32, i32, i32
  }
  func.func @transform_7(%arg0: i32) -> (i32, i32, i32) {
    %c0_i32 = arith.constant 0 : i32
    %c0_i32_0 = arith.constant 0 : i32
    %c0_i32_1 = arith.constant 0 : i32
    return %arg0, %c0_i32, %c0_i32_0 : i32, i32, i32
  }
  func.func @transform_8(%arg0: i32) -> (i32, i32, i32) {
    %c0_i32 = arith.constant 0 : i32
    %c0_i32_0 = arith.constant 0 : i32
    %c0_i32_1 = arith.constant 0 : i32
    return %arg0, %c0_i32, %c0_i32_0 : i32, i32, i32
  }
  func.func @transform_9(%arg0: i32) -> (i32, i32, i32) {
    %c0_i32 = arith.constant 0 : i32
    %c0_i32_0 = arith.constant 0 : i32
    %c0_i32_1 = arith.constant 0 : i32
    return %arg0, %c0_i32, %c0_i32_0 : i32, i32, i32
  }
  func.func @transform_10(%arg0: i32) -> (i32, i32, i32) {
    %c0_i32 = arith.constant 0 : i32
    %c0_i32_0 = arith.constant 0 : i32
    %c0_i32_1 = arith.constant 0 : i32
    return %arg0, %c0_i32, %c0_i32_0 : i32, i32, i32
  }
  func.func @transform_11(%arg0: i32) -> (i32, i32, i32) {
    %c0_i32 = arith.constant 0 : i32
    %c0_i32_0 = arith.constant 0 : i32
    %c0_i32_1 = arith.constant 0 : i32
    return %arg0, %c0_i32, %c0_i32_0 : i32, i32, i32
  }
  func.func @transform_12(%arg0: i32) -> (i32, i32, i32) {
    %c0_i32 = arith.constant 0 : i32
    %c0_i32_0 = arith.constant 0 : i32
    %c0_i32_1 = arith.constant 0 : i32
    return %arg0, %c0_i32, %c0_i32_0 : i32, i32, i32
  }
  func.func @transform_13(%arg0: i32) -> (i32, i32, i32) {
    %c0_i32 = arith.constant 0 : i32
    %c0_i32_0 = arith.constant 0 : i32
    %c0_i32_1 = arith.constant 0 : i32
    return %arg0, %c0_i32, %c0_i32_0 : i32, i32, i32
  }
  func.func @transform_14(%arg0: i32) -> (i32, i32) {
    %c0_i32 = arith.constant 0 : i32
    %c0_i32_0 = arith.constant 0 : i32
    %c0_i32_1 = arith.constant 0 : i32
    return %c0_i32, %c0_i32_0 : i32, i32
  }
  func.func @transform_15(%arg0: i32) -> (i32, i32) {
    %c0_i32 = arith.constant 0 : i32
    %c0_i32_0 = arith.constant 0 : i32
    %c0_i32_1 = arith.constant 0 : i32
    return %c0_i32, %c0_i32_0 : i32, i32
  }
  func.func @transform_16(%arg0: i32) -> (i32, i32) {
    %c0_i32 = arith.constant 0 : i32
    %c0_i32_0 = arith.constant 0 : i32
    %c0_i32_1 = arith.constant 0 : i32
    return %c0_i32, %c0_i32_0 : i32, i32
  }
  func.func @transform_17(%arg0: i32) -> (i32, i32, i32) {
    %c0_i32 = arith.constant 0 : i32
    %c0_i32_0 = arith.constant 0 : i32
    %c0_i32_1 = arith.constant 0 : i32
    return %arg0, %c0_i32, %c0_i32_0 : i32, i32, i32
  }
  func.func @transform_18(%arg0: i32) -> (i32, i32, i32) {
    %c0_i32 = arith.constant 0 : i32
    %c0_i32_0 = arith.constant 0 : i32
    %c0_i32_1 = arith.constant 0 : i32
    return %arg0, %c0_i32, %c0_i32_0 : i32, i32, i32
  }
}

</mosaic_0001>

<llo_original>
// kernel: tpu_custom_call.1
$region0: #{tpu_custom_call.1}
  #allocation0 [shape = 'u32[]', space=smem, size = 0x4, offset = 0x4, fixed_abs, tag = 'smem constant byte address 0x4 - core index']
  #allocation1 [shape = 'u32[144,128]{1,0:T(1,128)}', space=vmem, size = 0x12000, scoped, tag = 'internal scratch']
  #allocation2 [shape = 'f32[2,32]{1,0:T(2,128)}', space=vmem, size = 0x400, scoped, tag = 'scratch operand']
  %s0 = inlined_call_operand.hbm [shape: f32[2,32], index: 0, kind: input, shape index: {}]
  %s1 = inlined_call_operand.hbm [shape: bf16[16,32], index: 1, kind: input, shape index: {}]
  %s2 = inlined_call_operand.vmem [shape: f32[16,1], index: 2, kind: input, shape index: {}]
  %s3 = inlined_call_operand.vmem [shape: f32[32,4], index: 3, kind: input, shape index: {}]
  %s4 = inlined_call_operand.hbm [shape: f32[4,32], index: 4, kind: input, shape index: {}]
  %s5 = inlined_call_operand.vmem [shape: bf16[2,32,96], index: 5, kind: input, shape index: {}]
  %s6 = inlined_call_operand.vmem [shape: bf16[2,32,32], index: 6, kind: input, shape index: {}]
  %s7 = inlined_call_operand.vmem [shape: bf16[2,32,32], index: 7, kind: input, shape index: {}]
  %s8 = inlined_call_operand.vmem [shape: bf16[2,32,64], index: 8, kind: input, shape index: {}]
  %s9 = inlined_call_operand.vmem [shape: bf16[2,32,32], index: 9, kind: input, shape index: {}]
  %s10 = inlined_call_operand.hbm [shape: bf16[2,32,64], index: 10, kind: input, shape index: {}]
  %s11 = inlined_call_operand.vmem [shape: bf16[2,64,32], index: 11, kind: input, shape index: {}]
  %s12 = inlined_call_operand.vmem [shape: f32[2,3,32], index: 12, kind: input, shape index: {}]
  %s13 = inlined_call_operand.vmem [shape: f32[2,3,32], index: 13, kind: input, shape index: {}]
  %s14 = inlined_call_operand.vmem [shape: f32[1,32], index: 14, kind: input, shape index: {}]
  %s15 = inlined_call_operand.vmem [shape: f32[1,32], index: 15, kind: input, shape index: {}]
  %s16 = inlined_call_operand.hbm [shape: bf16[2,32], index: 16, kind: output, shape index: {0}]
  %s17 = inlined_call_operand.hbm [shape: bf16[2,2,64], index: 17, kind: output, shape index: {1}]
  %s18 = inlined_call_operand.hbm [shape: bf16[2,16,64], index: 18, kind: output, shape index: {2}]
  %19 = xla_tuple %s16, %s17, %s18
  %s20 = sld [smem:[#allocation0]]
  $region137: #{tpu_custom_call.1} parent=0
    _
  %s22 = ssub.s32 1, %s20
  %s23 = scalar_select 0, %s22, %s20
  $region1: #{tpu_custom_call.1} parent=0
    #allocation3 [shape = 'u8[1024]{0}', space=vmem, size = 0x400, scoped, tag = 'input window, operand 0, single buffered']
    #allocation4 [shape = 's32[2]{0}', space=sflag, size = 0x8, scoped, tag = 'scoped memory for tpu_custom_call.1']
    #allocation5 [shape = 's32[2]{0}', space=sflag, size = 0x8, scoped, tag = 'scoped memory for tpu_custom_call.1']
    #allocation6 [shape = 'u8[4096]{0}', space=vmem, size = 0x1000, scoped, tag = 'input window, operand 1, single buffered']
    #allocation7 [shape = 's32[1]{0}', space=sflag, size = 0x4, scoped, tag = 'scoped memory for tpu_custom_call.1']
    #allocation8 [shape = 'u8[2048]{0}', space=vmem, size = 0x800, scoped, tag = 'input window, operand 4, single buffered']
    #allocation9 [shape = 'u8[16384]{0}', space=vmem, size = 0x4000, scoped, tag = 'input window, operand 10']
    #allocation10 [shape = 's32[2]{0}', space=sflag, size = 0x8, scoped, tag = 'scoped memory for tpu_custom_call.1']
    #allocation11 [shape = 'u8[512]{0}', space=vmem, size = 0x400, scoped, tag = 'output window, operand 0, single buffered']
    #allocation12 [shape = 'u8[1024]{0}', space=vmem, size = 0x400, scoped, tag = 'output window, operand 1']
    #allocation13 [shape = 's32[2]{0}', space=sflag, size = 0x8, scoped, tag = 'scoped memory for tpu_custom_call.1']
    #allocation14 [shape = 'u8[8192]{0}', space=vmem, size = 0x2000, scoped, tag = 'output window, operand 2']
    %24 = vsyncpa [#allocation4], 0
    %25 = vsyncpa [#allocation7], 0
    %26 = vsyncpa [#allocation10], 0
    %s27 = scalar_lea.sflag [#allocation10], 1
    %28 = vsyncpa %s27, 0
    %29 = vsyncpa [#allocation5], 0
    %30 = vsyncpa [#allocation13], 0
    %s31 = scalar_lea.sflag [#allocation13], 1
    %32 = vsyncpa %s31, 0
    loop: start=0, step=1, limit=4
    $region2: #{tpu_custom_call.1} parent=1 // loop_pre_header
      _
    $region3: #{tpu_custom_call.1} parent=1 // loop_header
      %s34 = sphi 0, %s38
      %p35 = scmp.ge.s32.totalorder %s34, 4
      %s42 = sphi 0, %s42
      %s44 = sphi 0, %s42
      %s45 = sphi 0, %s44
      %s59 = sphi 0, %s45
      %s63 = sphi 0, %s63
      %s65 = sphi 0, %s63
      %s66 = sphi 0, %s65
      %s80 = sphi 0, %s66
      %s84 = sphi 0, %s84
      %s86 = sphi 0, %s84
      %s87 = sphi 0, %s86
      %s101 = sphi 0, %s87
      %s105 = sphi 0, %s105
      %s107 = sphi 0, %s105
      %s108 = sphi 0, %s107
      %s122 = sphi 0, %s108
      %s126 = sphi 0, %s126
      %s128 = sphi 0, %s126
      %s129 = sphi 0, %s128
      %s143 = sphi 0, %s129
      %s149 = sphi 0, %s151
      %s152 = sphi 0, %s149
      %s153 = sphi 0, %s152
      %s169 = sphi 0, %s153
      %s175 = sphi 0, %s177
      %s178 = sphi 0, %s175
      %s179 = sphi 0, %s178
      %s195 = sphi 0, %s179
      %s201 = sphi 0, %s203
      %s204 = sphi 0, %s201
      %s205 = sphi 0, %s204
      %s221 = sphi 0, %s205
      %s227 = sphi 0, %s229
      %s230 = sphi 0, %s227
      %s231 = sphi 0, %s230
      %s247 = sphi 0, %s231
      %s253 = sphi 0, %s255
      %s256 = sphi 0, %s253
      %s257 = sphi 0, %s256
      %s273 = sphi 0, %s257
      %s279 = sphi 0, %s281
      %s282 = sphi 0, %s279
      %s283 = sphi 0, %s282
      %s299 = sphi 0, %s283
      %s305 = sphi 0, %s307
      %s308 = sphi 0, %s305
      %s309 = sphi 0, %s308
      %s325 = sphi 0, %s309
      %s331 = sphi 0, %s333
      %s334 = sphi 0, %s331
      %s335 = sphi 0, %s334
      %s351 = sphi 0, %s335
      %s357 = sphi 0, %s359
      %s360 = sphi 0, %s357
      %s361 = sphi 0, %s360
      %s377 = sphi 0, %s361
      %s381 = sphi 0, %s381
      %s383 = sphi 0, %s381
      %s384 = sphi 0, %s383
      %s398 = sphi 0, %s384
      %s402 = sphi 0, %s402
      %s404 = sphi 0, %s402
      %s405 = sphi 0, %s404
      %s419 = sphi 0, %s405
      %s423 = sphi 0, %s423
      %s425 = sphi 0, %s423
      %s426 = sphi 0, %s425
      %s440 = sphi 0, %s426
      %s446 = sphi 0, %s448
      %s449 = sphi 0, %s446
      %s450 = sphi 0, %s449
      %s466 = sphi 0, %s450
      %s472 = sphi 0, %s474
      %s475 = sphi 0, %s472
      %s476 = sphi 0, %s475
      %s492 = sphi 0, %s476
    $region4: #{tpu_custom_call.1} parent=1 // loop_header_branch
      %37 = sbr.rel (%p35) target = $region8
    $region5: #{tpu_custom_call.1} parent=1 // loop_body
      %s39 = ssub.s32 %s34, 1
      %s40 = ssub.s32 %s34, 2
      %s41 = sadd.s32 %s34, 1
      %s43 = sadd.s32 %s42, 1
      %p46 = scmp.eq.s32.totalorder %s34, 1
      %p47 = scmp.ne.s32.totalorder %s42, %s44
      %p48 = scmp.eq.s32.totalorder %s34, 0
      %p49 = por %p47, %p48
      %p50 = scmp.ne.s32.totalorder %s42, %s44
      %p51 = scmp.eq.s32.totalorder %s39, 1
      %p52 = por %p50, %p51
      %p53 = scmp.ne.s32.totalorder %s44, %s45
      %p54 = scmp.eq.s32.totalorder %s39, 0
      %p55 = por %p53, %p54
      %p56 = scmp.ne.s32.totalorder %s44, %s45
      %p57 = scmp.eq.s32.totalorder %s40, 1
      %p58 = por %p56, %p57
      %p60 = scmp.ne.s32.totalorder %s45, %s59
      %p61 = scmp.eq.s32.totalorder %s40, 0
      %p62 = por %p60, %p61
      %s64 = sadd.s32 %s63, 1
      %p67 = scmp.eq.s32.totalorder %s34, 1
      %p68 = scmp.ne.s32.totalorder %s63, %s65
      %p69 = scmp.eq.s32.totalorder %s34, 0
      %p70 = por %p68, %p69
      %p71 = scmp.ne.s32.totalorder %s63, %s65
      %p72 = scmp.eq.s32.totalorder %s39, 1
      %p73 = por %p71, %p72
      %p74 = scmp.ne.s32.totalorder %s65, %s66
      %p75 = scmp.eq.s32.totalorder %s39, 0
      %p76 = por %p74, %p75
      %p77 = scmp.ne.s32.totalorder %s65, %s66
      %p78 = scmp.eq.s32.totalorder %s40, 1
      %p79 = por %p77, %p78
      %p81 = scmp.ne.s32.totalorder %s66, %s80
      %p82 = scmp.eq.s32.totalorder %s40, 0
      %p83 = por %p81, %p82
      %s85 = sadd.s32 %s84, 1
      %p88 = scmp.eq.s32.totalorder %s34, 1
      %p89 = scmp.ne.s32.totalorder %s84, %s86
      %p90 = scmp.eq.s32.totalorder %s34, 0
      %p91 = por %p89, %p90
      %p92 = scmp.ne.s32.totalorder %s84, %s86
      %p93 = scmp.eq.s32.totalorder %s39, 1
      %p94 = por %p92, %p93
      %p95 = scmp.ne.s32.totalorder %s86, %s87
      %p96 = scmp.eq.s32.totalorder %s39, 0
      %p97 = por %p95, %p96
      %p98 = scmp.ne.s32.totalorder %s86, %s87
      %p99 = scmp.eq.s32.totalorder %s40, 1
      %p100 = por %p98, %p99
      %p102 = scmp.ne.s32.totalorder %s87, %s101
      %p103 = scmp.eq.s32.totalorder %s40, 0
      %p104 = por %p102, %p103
      %s106 = sadd.s32 %s105, 1
      %p109 = scmp.eq.s32.totalorder %s34, 1
      %p110 = scmp.ne.s32.totalorder %s105, %s107
      %p111 = scmp.eq.s32.totalorder %s34, 0
      %p112 = por %p110, %p111
      %p113 = scmp.ne.s32.totalorder %s105, %s107
      %p114 = scmp.eq.s32.totalorder %s39, 1
      %p115 = por %p113, %p114
      %p116 = scmp.ne.s32.totalorder %s107, %s108
      %p117 = scmp.eq.s32.totalorder %s39, 0
      %p118 = por %p116, %p117
      %p119 = scmp.ne.s32.totalorder %s107, %s108
      %p120 = scmp.eq.s32.totalorder %s40, 1
      %p121 = por %p119, %p120
      %p123 = scmp.ne.s32.totalorder %s108, %s122
      %p124 = scmp.eq.s32.totalorder %s40, 0
      %p125 = por %p123, %p124
      %s127 = sadd.s32 %s126, 1
      %p130 = scmp.eq.s32.totalorder %s34, 1
      %p131 = scmp.ne.s32.totalorder %s126, %s128
      %p132 = scmp.eq.s32.totalorder %s34, 0
      %p133 = por %p131, %p132
      %p134 = scmp.ne.s32.totalorder %s126, %s128
      %p135 = scmp.eq.s32.totalorder %s39, 1
      %p136 = por %p134, %p135
      %p137 = scmp.ne.s32.totalorder %s128, %s129
      %p138 = scmp.eq.s32.totalorder %s39, 0
      %p139 = por %p137, %p138
      %p140 = scmp.ne.s32.totalorder %s128, %s129
      %p141 = scmp.eq.s32.totalorder %s40, 1
      %p142 = por %p140, %p141
      %p144 = scmp.ne.s32.totalorder %s129, %s143
      %p145 = scmp.eq.s32.totalorder %s40, 0
      %p146 = por %p144, %p145
      %s147 = ssub.s32 %s34, %s41
      %p148 = scmp.eq.s32.totalorder %s147, 0
      %s150 = sadd.s32 %s149, 1
      %s151 = scalar_select %p148, %s149, %s150
      %p154 = pneg %p148
      %p155 = scmp.eq.s32.totalorder %s34, 1
      %p156 = por %p154, %p155
      %p157 = scmp.ne.s32.totalorder %s149, %s152
      %p158 = scmp.eq.s32.totalorder %s34, 0
      %p159 = por %p157, %p158
      %p160 = scmp.ne.s32.totalorder %s149, %s152
      %p161 = scmp.eq.s32.totalorder %s39, 1
      %p162 = por %p160, %p161
      %p163 = scmp.ne.s32.totalorder %s152, %s153
      %p164 = scmp.eq.s32.totalorder %s39, 0
      %p165 = por %p163, %p164
      %p166 = scmp.ne.s32.totalorder %s152, %s153
      %p167 = scmp.eq.s32.totalorder %s40, 1
      %p168 = por %p166, %p167
      %p170 = scmp.ne.s32.totalorder %s153, %s169
      %p171 = scmp.eq.s32.totalorder %s40, 0
      %p172 = por %p170, %p171
      %s173 = ssub.s32 %s34, %s41
      %p174 = scmp.eq.s32.totalorder %s173, 0
      %s176 = sadd.s32 %s175, 1
      %s177 = scalar_select %p174, %s175, %s176
      %p180 = pneg %p174
      %p181 = scmp.eq.s32.totalorder %s34, 1
      %p182 = por %p180, %p181
      %p183 = scmp.ne.s32.totalorder %s175, %s178
      %p184 = scmp.eq.s32.totalorder %s34, 0
      %p185 = por %p183, %p184
      %p186 = scmp.ne.s32.totalorder %s175, %s178
      %p187 = scmp.eq.s32.totalorder %s39, 1
      %p188 = por %p186, %p187
      %p189 = scmp.ne.s32.totalorder %s178, %s179
      %p190 = scmp.eq.s32.totalorder %s39, 0
      %p191 = por %p189, %p190
      %p192 = scmp.ne.s32.totalorder %s178, %s179
      %p193 = scmp.eq.s32.totalorder %s40, 1
      %p194 = por %p192, %p193
      %p196 = scmp.ne.s32.totalorder %s179, %s195
      %p197 = scmp.eq.s32.totalorder %s40, 0
      %p198 = por %p196, %p197
      %s199 = ssub.s32 %s34, %s41
      %p200 = scmp.eq.s32.totalorder %s199, 0
      %s202 = sadd.s32 %s201, 1
      %s203 = scalar_select %p200, %s201, %s202
      %p206 = pneg %p200
      %p207 = scmp.eq.s32.totalorder %s34, 1
      %p208 = por %p206, %p207
      %p209 = scmp.ne.s32.totalorder %s201, %s204
      %p210 = scmp.eq.s32.totalorder %s34, 0
      %p211 = por %p209, %p210
      %p212 = scmp.ne.s32.totalorder %s201, %s204
      %p213 = scmp.eq.s32.totalorder %s39, 1
      %p214 = por %p212, %p213
      %p215 = scmp.ne.s32.totalorder %s204, %s205
      %p216 = scmp.eq.s32.totalorder %s39, 0
      %p217 = por %p215, %p216
      %p218 = scmp.ne.s32.totalorder %s204, %s205
      %p219 = scmp.eq.s32.totalorder %s40, 1
      %p220 = por %p218, %p219
      %p222 = scmp.ne.s32.totalorder %s205, %s221
      %p223 = scmp.eq.s32.totalorder %s40, 0
      %p224 = por %p222, %p223
      %s225 = ssub.s32 %s34, %s41
      %p226 = scmp.eq.s32.totalorder %s225, 0
      %s228 = sadd.s32 %s227, 1
      %s229 = scalar_select %p226, %s227, %s228
      %p232 = pneg %p226
      %p233 = scmp.eq.s32.totalorder %s34, 1
      %p234 = por %p232, %p233
      %p235 = scmp.ne.s32.totalorder %s227, %s230
      %p236 = scmp.eq.s32.totalorder %s34, 0
      %p237 = por %p235, %p236
      %p238 = scmp.ne.s32.totalorder %s227, %s230
      %p239 = scmp.eq.s32.totalorder %s39, 1
      %p240 = por %p238, %p239
      %p241 = scmp.ne.s32.totalorder %s230, %s231
      %p242 = scmp.eq.s32.totalorder %s39, 0
      %p243 = por %p241, %p242
      %p244 = scmp.ne.s32.totalorder %s230, %s231
      %p245 = scmp.eq.s32.totalorder %s40, 1
      %p246 = por %p244, %p245
      %p248 = scmp.ne.s32.totalorder %s231, %s247
      %p249 = scmp.eq.s32.totalorder %s40, 0
      %p250 = por %p248, %p249
      %s251 = ssub.s32 %s34, %s41
      %p252 = scmp.eq.s32.totalorder %s251, 0
      %s254 = sadd.s32 %s253, 1
      %s255 = scalar_select %p252, %s253, %s254
      %p258 = pneg %p252
      %p259 = scmp.eq.s32.totalorder %s34, 1
      %p260 = por %p258, %p259
      %p261 = scmp.ne.s32.totalorder %s253, %s256
      %p262 = scmp.eq.s32.totalorder %s34, 0
      %p263 = por %p261, %p262
      %p264 = scmp.ne.s32.totalorder %s253, %s256
      %p265 = scmp.eq.s32.totalorder %s39, 1
      %p266 = por %p264, %p265
      %p267 = scmp.ne.s32.totalorder %s256, %s257
      %p268 = scmp.eq.s32.totalorder %s39, 0
      %p269 = por %p267, %p268
      %p270 = scmp.ne.s32.totalorder %s256, %s257
      %p271 = scmp.eq.s32.totalorder %s40, 1
      %p272 = por %p270, %p271
      %p274 = scmp.ne.s32.totalorder %s257, %s273
      %p275 = scmp.eq.s32.totalorder %s40, 0
      %p276 = por %p274, %p275
      %s277 = ssub.s32 %s34, %s41
      %p278 = scmp.eq.s32.totalorder %s277, 0
      %s280 = sadd.s32 %s279, 1
      %s281 = scalar_select %p278, %s279, %s280
      %p284 = pneg %p278
      %p285 = scmp.eq.s32.totalorder %s34, 1
      %p286 = por %p284, %p285
      %p287 = scmp.ne.s32.totalorder %s279, %s282
      %p288 = scmp.eq.s32.totalorder %s34, 0
      %p289 = por %p287, %p288
      %p290 = scmp.ne.s32.totalorder %s279, %s282
      %p291 = scmp.eq.s32.totalorder %s39, 1
      %p292 = por %p290, %p291
      %p293 = scmp.ne.s32.totalorder %s282, %s283
      %p294 = scmp.eq.s32.totalorder %s39, 0
      %p295 = por %p293, %p294
      %p296 = scmp.ne.s32.totalorder %s282, %s283
      %p297 = scmp.eq.s32.totalorder %s40, 1
      %p298 = por %p296, %p297
      %p300 = scmp.ne.s32.totalorder %s283, %s299
      %p301 = scmp.eq.s32.totalorder %s40, 0
      %p302 = por %p300, %p301
      %s303 = ssub.s32 %s34, %s41
      %p304 = scmp.eq.s32.totalorder %s303, 0
      %s306 = sadd.s32 %s305, 1
      %s307 = scalar_select %p304, %s305, %s306
      %p310 = pneg %p304
      %p311 = scmp.eq.s32.totalorder %s34, 1
      %p312 = por %p310, %p311
      %p313 = scmp.ne.s32.totalorder %s305, %s308
      %p314 = scmp.eq.s32.totalorder %s34, 0
      %p315 = por %p313, %p314
      %p316 = scmp.ne.s32.totalorder %s305, %s308
      %p317 = scmp.eq.s32.totalorder %s39, 1
      %p318 = por %p316, %p317
      %p319 = scmp.ne.s32.totalorder %s308, %s309
      %p320 = scmp.eq.s32.totalorder %s39, 0
      %p321 = por %p319, %p320
      %p322 = scmp.ne.s32.totalorder %s308, %s309
      %p323 = scmp.eq.s32.totalorder %s40, 1
      %p324 = por %p322, %p323
      %p326 = scmp.ne.s32.totalorder %s309, %s325
      %p327 = scmp.eq.s32.totalorder %s40, 0
      %p328 = por %p326, %p327
      %s329 = ssub.s32 %s34, %s41
      %p330 = scmp.eq.s32.totalorder %s329, 0
      %s332 = sadd.s32 %s331, 1
      %s333 = scalar_select %p330, %s331, %s332
      %p336 = pneg %p330
      %p337 = scmp.eq.s32.totalorder %s34, 1
      %p338 = por %p336, %p337
      %p339 = scmp.ne.s32.totalorder %s331, %s334
      %p340 = scmp.eq.s32.totalorder %s34, 0
      %p341 = por %p339, %p340
      %p342 = scmp.ne.s32.totalorder %s331, %s334
      %p343 = scmp.eq.s32.totalorder %s39, 1
      %p344 = por %p342, %p343
      %p345 = scmp.ne.s32.totalorder %s334, %s335
      %p346 = scmp.eq.s32.totalorder %s39, 0
      %p347 = por %p345, %p346
      %p348 = scmp.ne.s32.totalorder %s334, %s335
      %p349 = scmp.eq.s32.totalorder %s40, 1
      %p350 = por %p348, %p349
      %p352 = scmp.ne.s32.totalorder %s335, %s351
      %p353 = scmp.eq.s32.totalorder %s40, 0
      %p354 = por %p352, %p353
      %s355 = ssub.s32 %s34, %s41
      %p356 = scmp.eq.s32.totalorder %s355, 0
      %s358 = sadd.s32 %s357, 1
      %s359 = scalar_select %p356, %s357, %s358
      %p362 = pneg %p356
      %p363 = scmp.eq.s32.totalorder %s34, 1
      %p364 = por %p362, %p363
      %p365 = scmp.ne.s32.totalorder %s357, %s360
      %p366 = scmp.eq.s32.totalorder %s34, 0
      %p367 = por %p365, %p366
      %p368 = scmp.ne.s32.totalorder %s357, %s360
      %p369 = scmp.eq.s32.totalorder %s39, 1
      %p370 = por %p368, %p369
      %p371 = scmp.ne.s32.totalorder %s360, %s361
      %p372 = scmp.eq.s32.totalorder %s39, 0
      %p373 = por %p371, %p372
      %p374 = scmp.ne.s32.totalorder %s360, %s361
      %p375 = scmp.eq.s32.totalorder %s40, 1
      %p376 = por %p374, %p375
      %p378 = scmp.ne.s32.totalorder %s361, %s377
      %p379 = scmp.eq.s32.totalorder %s40, 0
      %p380 = por %p378, %p379
      %s382 = sadd.s32 %s381, 1
      %p385 = scmp.eq.s32.totalorder %s34, 1
      %p386 = scmp.ne.s32.totalorder %s381, %s383
      %p387 = scmp.eq.s32.totalorder %s34, 0
      %p388 = por %p386, %p387
      %p389 = scmp.ne.s32.totalorder %s381, %s383
      %p390 = scmp.eq.s32.totalorder %s39, 1
      %p391 = por %p389, %p390
      %p392 = scmp.ne.s32.totalorder %s383, %s384
      %p393 = scmp.eq.s32.totalorder %s39, 0
      %p394 = por %p392, %p393
      %p395 = scmp.ne.s32.totalorder %s383, %s384
      %p396 = scmp.eq.s32.totalorder %s40, 1
      %p397 = por %p395, %p396
      %p399 = scmp.ne.s32.totalorder %s384, %s398
      %p400 = scmp.eq.s32.totalorder %s40, 0
      %p401 = por %p399, %p400
      %s403 = sadd.s32 %s402, 1
      %p406 = scmp.eq.s32.totalorder %s34, 1
      %p407 = scmp.ne.s32.totalorder %s402, %s404
      %p408 = scmp.eq.s32.totalorder %s34, 0
      %p409 = por %p407, %p408
      %p410 = scmp.ne.s32.totalorder %s402, %s404
      %p411 = scmp.eq.s32.totalorder %s39, 1
      %p412 = por %p410, %p411
      %p413 = scmp.ne.s32.totalorder %s404, %s405
      %p414 = scmp.eq.s32.totalorder %s39, 0
      %p415 = por %p413, %p414
      %p416 = scmp.ne.s32.totalorder %s404, %s405
      %p417 = scmp.eq.s32.totalorder %s40, 1
      %p418 = por %p416, %p417
      %p420 = scmp.ne.s32.totalorder %s405, %s419
      %p421 = scmp.eq.s32.totalorder %s40, 0
      %p422 = por %p420, %p421
      %s424 = sadd.s32 %s423, 1
      %p427 = scmp.eq.s32.totalorder %s34, 1
      %p428 = scmp.ne.s32.totalorder %s423, %s425
      %p429 = scmp.eq.s32.totalorder %s34, 0
      %p430 = por %p428, %p429
      %p431 = scmp.ne.s32.totalorder %s423, %s425
      %p432 = scmp.eq.s32.totalorder %s39, 1
      %p433 = por %p431, %p432
      %p434 = scmp.ne.s32.totalorder %s425, %s426
      %p435 = scmp.eq.s32.totalorder %s39, 0
      %p436 = por %p434, %p435
      %p437 = scmp.ne.s32.totalorder %s425, %s426
      %p438 = scmp.eq.s32.totalorder %s40, 1
      %p439 = por %p437, %p438
      %p441 = scmp.ne.s32.totalorder %s426, %s440
      %p442 = scmp.eq.s32.totalorder %s40, 0
      %p443 = por %p441, %p442
      %s444 = ssub.s32 %s34, %s41
      %p445 = scmp.eq.s32.totalorder %s444, 0
      %s447 = sadd.s32 %s446, 1
      %s448 = scalar_select %p445, %s446, %s447
      %p451 = pneg %p445
      %p452 = scmp.eq.s32.totalorder %s34, 1
      %p453 = por %p451, %p452
      %p454 = scmp.ne.s32.totalorder %s446, %s449
      %p455 = scmp.eq.s32.totalorder %s34, 0
      %p456 = por %p454, %p455
      %p457 = scmp.ne.s32.totalorder %s446, %s449
      %p458 = scmp.eq.s32.totalorder %s39, 1
      %p459 = por %p457, %p458
      %p460 = scmp.ne.s32.totalorder %s449, %s450
      %p461 = scmp.eq.s32.totalorder %s39, 0
      %p462 = por %p460, %p461
      %p463 = scmp.ne.s32.totalorder %s449, %s450
      %p464 = scmp.eq.s32.totalorder %s40, 1
      %p465 = por %p463, %p464
      %p467 = scmp.ne.s32.totalorder %s450, %s466
      %p468 = scmp.eq.s32.totalorder %s40, 0
      %p469 = por %p467, %p468
      %s470 = ssub.s32 %s34, %s41
      %p471 = scmp.eq.s32.totalorder %s470, 0
      %s473 = sadd.s32 %s472, 1
      %s474 = scalar_select %p471, %s472, %s473
      %p477 = pneg %p471
      %p478 = scmp.eq.s32.totalorder %s34, 1
      %p479 = por %p477, %p478
      %p480 = scmp.ne.s32.totalorder %s472, %s475
      %p481 = scmp.eq.s32.totalorder %s34, 0
      %p482 = por %p480, %p481
      %p483 = scmp.ne.s32.totalorder %s472, %s475
      %p484 = scmp.eq.s32.totalorder %s39, 1
      %p485 = por %p483, %p484
      %p486 = scmp.ne.s32.totalorder %s475, %s476
      %p487 = scmp.eq.s32.totalorder %s39, 0
      %p488 = por %p486, %p487
      %p489 = scmp.ne.s32.totalorder %s475, %s476
      %p490 = scmp.eq.s32.totalorder %s40, 1
      %p491 = por %p489, %p490
      %p493 = scmp.ne.s32.totalorder %s476, %s492
      %p494 = scmp.eq.s32.totalorder %s40, 0
      %p495 = por %p493, %p494
      %p496 = scmp.le.s32.totalorder 1, %s34
      %p497 = scmp.lt.s32.totalorder %s34, 3
      %p498 = pnand %p496, %p497
      %p499 = pneg %p498
      // Predicated region
      $region9: #{tpu_custom_call.1} parent=5 // pred_check
        _
      $region10: #{tpu_custom_call.1} parent=5 // pred_check_branch
        %501 = sbr.rel (%p498) target = $region12
      $region11: #{tpu_custom_call.1} parent=5 // pred_region
        %s502 = ssub.s32 %s34, 1
        // Predicated region
        $region13: #{tpu_custom_call.1} parent=11 // pred_check
          %p503 = pneg %p55
        $region14: #{tpu_custom_call.1} parent=11 // pred_check_branch
          %505 = sbr.rel (%p503) target = $region16
        $region15: #{tpu_custom_call.1} parent=11 // pred_region
          %s507 = ssub.s32 32, 32
          %508 = vsyncadd [#allocation4], %s507
          %s510 = sshll.u32 [#allocation3], 4
          %s511 = int_to_ptr.vmem [resolvable:$true] %s510
          %513 = dma.hbm_to_vmem [thread:$0]  %s0, 32, %s511, [#allocation4]
        $region16: #{tpu_custom_call.1} parent=11 // pred_fallthru
          _
        // Predicated region
        $region17: #{tpu_custom_call.1} parent=11 // pred_check
          %p514 = pneg %p76
        $region18: #{tpu_custom_call.1} parent=11 // pred_check_branch
          %516 = sbr.rel (%p514) target = $region20
        $region19: #{tpu_custom_call.1} parent=11 // pred_region
          %s518 = ssub.s32 128, 128
          %519 = vsyncadd [#allocation7], %s518
          %s520 = sshll.u32 [#allocation6], 4
          %s521 = int_to_ptr.vmem [resolvable:$true] %s520
          %526 = dma.hbm_to_vmem [thread:$0]  %s1, 128, %s521, [#allocation7], 64, 64, 4
        $region20: #{tpu_custom_call.1} parent=11 // pred_fallthru
          _
        // Predicated region
        $region21: #{tpu_custom_call.1} parent=11 // pred_check
          %p527 = pneg %p97
        $region22: #{tpu_custom_call.1} parent=11 // pred_check_branch
          %529 = sbr.rel (%p527) target = $region24
        $region23: #{tpu_custom_call.1} parent=11 // pred_region
          _
        $region24: #{tpu_custom_call.1} parent=11 // pred_fallthru
          _
        // Predicated region
        $region25: #{tpu_custom_call.1} parent=11 // pred_check
          %p530 = pneg %p118
        $region26: #{tpu_custom_call.1} parent=11 // pred_check_branch
          %532 = sbr.rel (%p530) target = $region28
        $region27: #{tpu_custom_call.1} parent=11 // pred_region
          _
        $region28: #{tpu_custom_call.1} parent=11 // pred_fallthru
          _
        // Predicated region
        $region29: #{tpu_custom_call.1} parent=11 // pred_check
          %p533 = pneg %p139
        $region30: #{tpu_custom_call.1} parent=11 // pred_check_branch
          %535 = sbr.rel (%p533) target = $region32
        $region31: #{tpu_custom_call.1} parent=11 // pred_region
          %s537 = ssub.s32 64, 64
          %538 = vsyncadd [#allocation7], %s537
          %s540 = sshll.u32 [#allocation8], 4
          %s541 = int_to_ptr.vmem [resolvable:$true] %s540
          %543 = dma.hbm_to_vmem [thread:$0]  %s4, 64, %s541, [#allocation7]
        $region32: #{tpu_custom_call.1} parent=11 // pred_fallthru
          _
        // Predicated region
        $region33: #{tpu_custom_call.1} parent=11 // pred_check
          %p544 = pneg %p394
        $region34: #{tpu_custom_call.1} parent=11 // pred_check_branch
          %546 = sbr.rel (%p544) target = $region36
        $region35: #{tpu_custom_call.1} parent=11 // pred_region
          _
        $region36: #{tpu_custom_call.1} parent=11 // pred_fallthru
          _
        // Predicated region
        $region37: #{tpu_custom_call.1} parent=11 // pred_check
          %p547 = pneg %p415
        $region38: #{tpu_custom_call.1} parent=11 // pred_check_branch
          %549 = sbr.rel (%p547) target = $region40
        $region39: #{tpu_custom_call.1} parent=11 // pred_region
          _
        $region40: #{tpu_custom_call.1} parent=11 // pred_fallthru
          _
      $region12: #{tpu_custom_call.1} parent=5 // pred_fallthru
        _
      %p550 = scmp.lt.s32.totalorder %s34, 2
      // Predicated region
      $region41: #{tpu_custom_call.1} parent=5 // pred_check
        %p551 = pneg %p550
      $region42: #{tpu_custom_call.1} parent=5 // pred_check_branch
        %553 = sbr.rel (%p551) target = $region44
      $region43: #{tpu_custom_call.1} parent=5 // pred_region
        // Predicated region
        $region45: #{tpu_custom_call.1} parent=43 // pred_check
          %p554 = pneg %p159
        $region46: #{tpu_custom_call.1} parent=43 // pred_check_branch
          %556 = sbr.rel (%p554) target = $region48
        $region47: #{tpu_custom_call.1} parent=43 // pred_region
          %p557 = scmp.lt.s32.totalorder %s34, 1
          %s558 = scalar_select %p557, %s34, 1
          %s559 = smul.addr %s558, 4
          %s560 = smul.addr %s559, 4
          %s561 = scalar_lea.vmem %s5, %s560
        $region48: #{tpu_custom_call.1} parent=43 // pred_fallthru
          _
        // Predicated region
        $region49: #{tpu_custom_call.1} parent=43 // pred_check
          %p562 = pneg %p185
        $region50: #{tpu_custom_call.1} parent=43 // pred_check_branch
          %564 = sbr.rel (%p562) target = $region52
        $region51: #{tpu_custom_call.1} parent=43 // pred_region
          %p565 = scmp.lt.s32.totalorder %s34, 1
          %s566 = scalar_select %p565, %s34, 1
          %s567 = smul.addr %s566, 4
          %s568 = smul.addr %s567, 4
          %s569 = scalar_lea.vmem %s6, %s568
        $region52: #{tpu_custom_call.1} parent=43 // pred_fallthru
          _
        // Predicated region
        $region53: #{tpu_custom_call.1} parent=43 // pred_check
          %p570 = pneg %p211
        $region54: #{tpu_custom_call.1} parent=43 // pred_check_branch
          %572 = sbr.rel (%p570) target = $region56
        $region55: #{tpu_custom_call.1} parent=43 // pred_region
          %p573 = scmp.lt.s32.totalorder %s34, 1
          %s574 = scalar_select %p573, %s34, 1
          %s575 = smul.addr %s574, 4
          %s576 = smul.addr %s575, 4
          %s577 = scalar_lea.vmem %s7, %s576
        $region56: #{tpu_custom_call.1} parent=43 // pred_fallthru
          _
        // Predicated region
        $region57: #{tpu_custom_call.1} parent=43 // pred_check
          %p578 = pneg %p237
        $region58: #{tpu_custom_call.1} parent=43 // pred_check_branch
          %580 = sbr.rel (%p578) target = $region60
        $region59: #{tpu_custom_call.1} parent=43 // pred_region
          %p581 = scmp.lt.s32.totalorder %s34, 1
          %s582 = scalar_select %p581, %s34, 1
          %s583 = smul.addr %s582, 4
          %s584 = smul.addr %s583, 4
          %s585 = scalar_lea.vmem %s8, %s584
        $region60: #{tpu_custom_call.1} parent=43 // pred_fallthru
          _
        // Predicated region
        $region61: #{tpu_custom_call.1} parent=43 // pred_check
          %p586 = pneg %p263
        $region62: #{tpu_custom_call.1} parent=43 // pred_check_branch
          %588 = sbr.rel (%p586) target = $region64
        $region63: #{tpu_custom_call.1} parent=43 // pred_region
          %p589 = scmp.lt.s32.totalorder %s34, 1
          %s590 = scalar_select %p589, %s34, 1
          %s591 = smul.addr %s590, 4
          %s592 = smul.addr %s591, 4
          %s593 = scalar_lea.vmem %s9, %s592
        $region64: #{tpu_custom_call.1} parent=43 // pred_fallthru
          _
        // Predicated region
        $region65: #{tpu_custom_call.1} parent=43 // pred_check
          %p594 = pneg %p289
        $region66: #{tpu_custom_call.1} parent=43 // pred_check_branch
          %596 = sbr.rel (%p594) target = $region68
        $region67: #{tpu_custom_call.1} parent=43 // pred_region
          %s597 = sand.u32 %s279, 1
          %s598 = scalar_lea.sflag [#allocation10], %s597
          %s599 = sand.u32 %s279, 1
          %s600 = smul.addr %s599, 16
          %s601 = scalar_lea.vmem [#allocation9], %s600
          %s603 = ssub.s32 256, 256
          %604 = vsyncadd %s598, %s603
          %s605 = smul.addr %s34, 4
          %s606 = smul.addr %s605, 64
          %s607 = scalar_lea.hbm %s10, %s606
          %s608 = sshll.u32 %s601, 4
          %s609 = int_to_ptr.vmem [resolvable:$true] %s608
          %614 = dma.hbm_to_vmem [thread:$0]  %s607, 256, %s609, %s598, 64, 64, 4
        $region68: #{tpu_custom_call.1} parent=43 // pred_fallthru
          _
        // Predicated region
        $region69: #{tpu_custom_call.1} parent=43 // pred_check
          %p615 = pneg %p315
        $region70: #{tpu_custom_call.1} parent=43 // pred_check_branch
          %617 = sbr.rel (%p615) target = $region72
        $region71: #{tpu_custom_call.1} parent=43 // pred_region
          %p618 = scmp.lt.s32.totalorder %s34, 1
          %s619 = scalar_select %p618, %s34, 1
          %s620 = smul.addr %s619, 8
          %s621 = smul.addr %s620, 4
          %s622 = scalar_lea.vmem %s11, %s621
        $region72: #{tpu_custom_call.1} parent=43 // pred_fallthru
          _
        // Predicated region
        $region73: #{tpu_custom_call.1} parent=43 // pred_check
          %p623 = pneg %p341
        $region74: #{tpu_custom_call.1} parent=43 // pred_check_branch
          %625 = sbr.rel (%p623) target = $region76
        $region75: #{tpu_custom_call.1} parent=43 // pred_region
          %p626 = scmp.lt.s32.totalorder %s34, 1
          %s627 = scalar_select %p626, %s34, 1
          %s628 = smul.addr %s627, 4
          %s629 = scalar_lea.vmem %s12, %s628
        $region76: #{tpu_custom_call.1} parent=43 // pred_fallthru
          _
        // Predicated region
        $region77: #{tpu_custom_call.1} parent=43 // pred_check
          %p630 = pneg %p367
        $region78: #{tpu_custom_call.1} parent=43 // pred_check_branch
          %632 = sbr.rel (%p630) target = $region80
        $region79: #{tpu_custom_call.1} parent=43 // pred_region
          %p633 = scmp.lt.s32.totalorder %s34, 1
          %s634 = scalar_select %p633, %s34, 1
          %s635 = smul.addr %s634, 4
          %s636 = scalar_lea.vmem %s13, %s635
        $region80: #{tpu_custom_call.1} parent=43 // pred_fallthru
          _
      $region44: #{tpu_custom_call.1} parent=5 // pred_fallthru
        _
      %p637 = scmp.le.s32.totalorder 1, %s34
      %p638 = scmp.lt.s32.totalorder %s34, 3
      %p639 = pnand %p637, %p638
      %p640 = pneg %p639
      // Predicated region
      $region81: #{tpu_custom_call.1} parent=5 // pred_check
        _
      $region82: #{tpu_custom_call.1} parent=5 // pred_check_branch
        %642 = sbr.rel (%p639) target = $region84
      $region83: #{tpu_custom_call.1} parent=5 // pred_region
        %s643 = ssub.s32 %s34, 1
        // Predicated region
        $region85: #{tpu_custom_call.1} parent=83 // pred_check
          %p644 = pneg %p55
        $region86: #{tpu_custom_call.1} parent=83 // pred_check_branch
          %646 = sbr.rel (%p644) target = $region88
        $region87: #{tpu_custom_call.1} parent=83 // pred_region
          %647 = dma.done [#allocation4], 32
        $region88: #{tpu_custom_call.1} parent=83 // pred_fallthru
          _
        // Predicated region
        $region89: #{tpu_custom_call.1} parent=83 // pred_check
          %p648 = pneg %p76
        $region90: #{tpu_custom_call.1} parent=83 // pred_check_branch
          %650 = sbr.rel (%p648) target = $region92
        $region91: #{tpu_custom_call.1} parent=83 // pred_region
          %651 = dma.done [#allocation7], 128
        $region92: #{tpu_custom_call.1} parent=83 // pred_fallthru
          _
        // Predicated region
        $region93: #{tpu_custom_call.1} parent=83 // pred_check
          %p652 = pneg %p139
        $region94: #{tpu_custom_call.1} parent=83 // pred_check_branch
          %654 = sbr.rel (%p652) target = $region96
        $region95: #{tpu_custom_call.1} parent=83 // pred_region
          %655 = dma.done [#allocation7], 64
        $region96: #{tpu_custom_call.1} parent=83 // pred_fallthru
          _
        %s656 = sand.u32 %s282, 1
        %s657 = scalar_lea.sflag [#allocation10], %s656
        %s658 = sand.u32 %s282, 1
        %s659 = smul.addr %s658, 16
        %s660 = scalar_lea.vmem [#allocation9], %s659
        // Predicated region
        $region97: #{tpu_custom_call.1} parent=83 // pred_check
          %p661 = pneg %p295
        $region98: #{tpu_custom_call.1} parent=83 // pred_check_branch
          %663 = sbr.rel (%p661) target = $region100
        $region99: #{tpu_custom_call.1} parent=83 // pred_region
          %664 = dma.done %s657, 256
        $region100: #{tpu_custom_call.1} parent=83 // pred_fallthru
          _
        %p665 = pneg %p55
        %p666 = pneg %p52
        %p667 = pneg %p76
        %p668 = pneg %p73
        %p669 = pneg %p97
        %p670 = pneg %p94
        %p671 = pneg %p118
        %p672 = pneg %p115
        %p673 = pneg %p139
        %p674 = pneg %p136
        %p675 = scmp.lt.s32.totalorder %s39, 1
        %s676 = scalar_select %p675, %s39, 1
        %s677 = smul.addr %s676, 4
        %s678 = smul.addr %s677, 4
        %s679 = scalar_lea.vmem %s5, %s678
        %p680 = pneg %p165
        %p681 = pneg %p162
        %p682 = scmp.lt.s32.totalorder %s39, 1
        %s683 = scalar_select %p682, %s39, 1
        %s684 = smul.addr %s683, 4
        %s685 = smul.addr %s684, 4
        %s686 = scalar_lea.vmem %s6, %s685
        %p687 = pneg %p191
        %p688 = pneg %p188
        %p689 = scmp.lt.s32.totalorder %s39, 1
        %s690 = scalar_select %p689, %s39, 1
        %s691 = smul.addr %s690, 4
        %s692 = smul.addr %s691, 4
        %s693 = scalar_lea.vmem %s7, %s692
        %p694 = pneg %p217
        %p695 = pneg %p214
        %p696 = scmp.lt.s32.totalorder %s39, 1
        %s697 = scalar_select %p696, %s39, 1
        %s698 = smul.addr %s697, 4
        %s699 = smul.addr %s698, 4
        %s700 = scalar_lea.vmem %s8, %s699
        %p701 = pneg %p243
        %p702 = pneg %p240
        %p703 = scmp.lt.s32.totalorder %s39, 1
        %s704 = scalar_select %p703, %s39, 1
        %s705 = smul.addr %s704, 4
        %s706 = smul.addr %s705, 4
        %s707 = scalar_lea.vmem %s9, %s706
        %p708 = pneg %p269
        %p709 = pneg %p266
        %s710 = sand.u32 %s282, 1
        %s711 = scalar_lea.sflag [#allocation10], %s710
        %s712 = sand.u32 %s282, 1
        %s713 = smul.addr %s712, 16
        %s714 = scalar_lea.vmem [#allocation9], %s713
        %p715 = pneg %p295
        %p716 = pneg %p292
        %p717 = scmp.lt.s32.totalorder %s39, 1
        %s718 = scalar_select %p717, %s39, 1
        %s719 = smul.addr %s718, 8
        %s720 = smul.addr %s719, 4
        %s721 = scalar_lea.vmem %s11, %s720
        %p722 = pneg %p321
        %p723 = pneg %p318
        %p724 = scmp.lt.s32.totalorder %s39, 1
        %s725 = scalar_select %p724, %s39, 1
        %s726 = smul.addr %s725, 4
        %s727 = scalar_lea.vmem %s12, %s726
        %p728 = pneg %p347
        %p729 = pneg %p344
        %p730 = scmp.lt.s32.totalorder %s39, 1
        %s731 = scalar_select %p730, %s39, 1
        %s732 = smul.addr %s731, 4
        %s733 = scalar_lea.vmem %s13, %s732
        %p734 = pneg %p373
        %p735 = pneg %p370
        %p736 = pneg %p394
        %p737 = pneg %p391
        %p738 = pneg %p415
        %p739 = pneg %p412
        %p740 = pneg %p436
        %p741 = pneg %p433
        %p742 = pneg %p462
        %p743 = pneg %p459
        %s744 = sand.u32 %s39, 1
        %s745 = scalar_lea.sflag [#allocation13], %s744
        %s746 = sand.u32 %s449, 1
        %s747 = scalar_lea.vmem [#allocation12], %s746
        %p748 = pneg %p488
        %p749 = pneg %p485
        %s750 = sand.u32 %s39, 1
        %s751 = scalar_lea.sflag [#allocation13], %s750
        %s752 = sand.u32 %s475, 1
        %s753 = smul.addr %s752, 8
        %s754 = scalar_lea.vmem [#allocation14], %s753
        %p755 = scmp.lt.s32.totalorder %s39, 1
        %s756 = scalar_select %p755, %s39, 1
        %s757 = smul.addr %s756, 4
        %s758 = smul.addr %s757, 4
        %s759 = scalar_lea.vmem %s5, %s758
        %p760 = scmp.lt.s32.totalorder %s39, 1
        %s761 = scalar_select %p760, %s39, 1
        %s762 = smul.addr %s761, 4
        %s763 = smul.addr %s762, 4
        %s764 = scalar_lea.vmem %s6, %s763
        %p765 = scmp.lt.s32.totalorder %s39, 1
        %s766 = scalar_select %p765, %s39, 1
        %s767 = smul.addr %s766, 4
        %s768 = smul.addr %s767, 4
        %s769 = scalar_lea.vmem %s7, %s768
        %p770 = scmp.lt.s32.totalorder %s39, 1
        %s771 = scalar_select %p770, %s39, 1
        %s772 = smul.addr %s771, 4
        %s773 = smul.addr %s772, 4
        %s774 = scalar_lea.vmem %s8, %s773
        %p775 = scmp.lt.s32.totalorder %s39, 1
        %s776 = scalar_select %p775, %s39, 1
        %s777 = smul.addr %s776, 4
        %s778 = smul.addr %s777, 4
        %s779 = scalar_lea.vmem %s9, %s778
        %p780 = scmp.lt.s32.totalorder %s39, 1
        %s781 = scalar_select %p780, %s39, 1
        %s782 = smul.addr %s781, 8
        %s783 = smul.addr %s782, 4
        %s784 = scalar_lea.vmem %s11, %s783
        %p785 = scmp.lt.s32.totalorder %s39, 1
        %s786 = scalar_select %p785, %s39, 1
        %s787 = smul.addr %s786, 4
        %s788 = scalar_lea.vmem %s12, %s787
        %p789 = scmp.lt.s32.totalorder %s39, 1
        %s790 = scalar_select %p789, %s39, 1
        %s791 = smul.addr %s790, 4
        %s792 = scalar_lea.vmem %s13, %s791
        %p794 = scmp.eq.s32.totalorder %s39, 0
        // Predicated region
        $region101: #{tpu_custom_call.1} parent=83 // pred_check
          %p795 = pneg %p794
        $region102: #{tpu_custom_call.1} parent=83 // pred_check_branch
          %797 = sbr.rel (%p795) target = $region104
        $region103: #{tpu_custom_call.1} parent=83 // pred_region
          %v798 = vld [vmem:[#allocation3] sm:$0x3]
          %vm799 = vcmask 254976
          %800 = vst.msk [vmem:[#allocation2] sm:$0x3] %vm799, %v798
        $region104: #{tpu_custom_call.1} parent=83 // pred_fallthru
          _
        %v801 = vld [vmem:[#allocation2] sm:$0x3]
        %v802 = vld [vmem:[#allocation6] sm:$0xf]
        %v803 = vld [vmem:[#allocation6 + $0x4] sm:$0xf]
        %v804 = vld [vmem:[%s788] sm:$0x7]
        %v805 = vld [vmem:[%s792] sm:$0x7]
        %vm806 = vcmask 254976
        %v807 = vsel %vm806, %v801, 0.0
        %808 = vadd.xlane.f32.xlu0 %v807
        %v809 = vpop.xlane.xlu0 %808
        %v810 = vrcp.pop 32.0
        %v811 = vmul.f32 %v809, %v810
        %v812 = vsub.f32 %v801, %v811
        %v813 = vmul.f32 %v812, %v812
        %v814 = vsel %vm806, %v813, 0.0
        %815 = vadd.xlane.f32.xlu0 %v814
        %v816 = vpop.xlane.xlu0 %815
        %v817 = vmul.f32 %v816, %v810
        %v818 = vadd.f32 %v817, 1e-06
        %v819 = vrsqrt.pop %v818
        %v820 = vmul.f32 %v812, %v819
        %v821 = vlaneseq
        %v822 = vshrl.u32 %v821, 7
        %v823 = vsub.s32 0, %v822
        %v824 = vrot.slane %v804, %v823
        %v825 = vmul.f32 %v820, %v824
        %v826 = vlaneseq
        %v827 = vshrl.u32 %v826, 7
        %v828 = vsub.s32 0, %v827
        %v829 = vrot.slane %v805, %v828
        %v830 = vadd.f32 %v825, %v829
        %v831 = vld [vmem:[%s759] sm:$0xf]
        %v832 = vld [vmem:[%s759 + $0x4] sm:$0xf]
        %v833 = vld [vmem:[%s759 + $0x8] sm:$0xf]
        %v834 = vld [vmem:[%s759 + $0xc] sm:$0xf]
        %v835 = vpack.c.bf16 %v830, %v830
        %v840 = vunpack.c.l.b16 %v831
        %v841 = vunpack.c.l.b16 %v832
        %v842 = vunpack.c.l.b16 %v833
        %v843 = vunpack.c.l.b16 %v834
        %v844 = vpack.c.b16 %v841, %v840
        %v845 = vpack.c.b16 %v843, %v842
        %vm848 = vcmask 261120
        %v850 = vsel %vm848, %v835, 0
        %852 = vmatprep.subr.bf16.mxu0 0
        %853 = vmatpush1.bf16.msra.mxu0 %v844
        %854 = vmatprep.subr.bf16.mxu0 0
        %855 = vmatpush1.bf16.msra.mxu0 %v845
        %856 = vmatprep.subr.bf16.mxu0 0
        %857 = vmatpush1.bf16.msra.mxu0 0
        %858 = vmatprep.subr.bf16.mxu0 0
        %859 = vmatpush1.bf16.msra.mxu0 0
        %860 = vmatprep.subr.bf16.mxu0 0
        %861 = vmatpush1.bf16.msra.mxu0 0
        %862 = vmatprep.subr.bf16.mxu0 0
        %863 = vmatpush1.bf16.msra.mxu0 0
        %864 = vmatprep.subr.bf16.mxu0 0
        %865 = vmatpush1.bf16.msra.mxu0 0
        %866 = vmatprep.subr.bf16.mxu0 0
        %867 = vmatpush1.bf16.msra.mxu0 0
        %868 = vmatprep.subr.bf16.mxu0 0
        %869 = vmatpush1.bf16.msra.mxu0 0
        %870 = vmatprep.subr.bf16.mxu0 0
        %871 = vmatpush1.bf16.msra.mxu0 0
        %872 = vmatprep.subr.bf16.mxu0 0
        %873 = vmatpush1.bf16.msra.mxu0 0
        %874 = vmatprep.subr.bf16.mxu0 0
        %875 = vmatpush1.bf16.msra.mxu0 0
        %876 = vmatprep.subr.bf16.mxu0 0
        %877 = vmatpush1.bf16.msra.mxu0 0
        %878 = vmatprep.subr.bf16.mxu0 0
        %879 = vmatpush1.bf16.msra.mxu0 0
        %880 = vmatprep.subr.bf16.mxu0 0
        %881 = vmatpush1.bf16.msra.mxu0 0
        %882 = vmatprep.subr.bf16.mxu0 0
        %883 = vmatpush1.bf16.msra.mxu0 0
        %884 = vmatprep.mubr.bf16.mxu0 0
        %885 = vmatmul.mubr.bf16.gmra.mrb[0].mxu0 %v850
        %v886 = vpop.f32.mrb[0].mxu0
        %v887 = vadd.f32 0.0, %v886
        %v888 = vpop.f32.mrb[0].mxu0
        %v889 = vpop.f32.mrb[0].mxu0
        %v890 = vpop.f32.mrb[0].mxu0
        %891 = vdwg.mxu0
        %v892 = vpack.c.bf16 %v887, %v887
        %v895 = vunpack.c.l.s4 1966171168
        %v896 = vunpack.c.0.s8 %v895
        %v897 = vlaneseq
        %v898 = vshrl.u32 %v897, 7
        %v899 = vsub.s32 %v896, %v898
        %v900 = vrot.slane %v892, %v899
        %v902 = vunpack.c.l.s4 1966171168
        %v903 = vunpack.c.0.s8 %v902
        %v904 = vlaneseq
        %v905 = vshrl.u32 %v904, 7
        %v906 = vsub.s32 %v903, %v905
        %v907 = vrot.slane %v900, %v906
        %908 = vrot.lane.b32.xlu0 %v907, 96
        %v909 = vpop.permute.xlu0 %908
        %vm911 = vcmask 516096
        %912 = vst.msk [vmem:[%s747] sm:$0x1] %vm911, %v909
        %v913 = vld [vmem:[%s764] sm:$0xf]
        %v914 = vld [vmem:[%s764 + $0x4] sm:$0xf]
        %v915 = vld [vmem:[%s764 + $0x8] sm:$0xf]
        %v916 = vld [vmem:[%s764 + $0xc] sm:$0xf]
        %917 = vrot.lane.b32.xlu0 %v892, 64
        %v918 = vpop.permute.xlu0 %917
        %v923 = vunpack.c.l.b16 %v913
        %v924 = vunpack.c.l.b16 %v914
        %v925 = vunpack.c.l.b16 %v915
        %v926 = vunpack.c.l.b16 %v916
        %v927 = vpack.c.b16 %v924, %v923
        %v928 = vpack.c.b16 %v926, %v925
        %v932 = vsel %vm848, %v918, 0
        %934 = vmatprep.subr.bf16.mxu0 0
        %935 = vmatpush1.bf16.msra.mxu0 %v927
        %936 = vmatprep.subr.bf16.mxu0 0
        %937 = vmatpush1.bf16.msra.mxu0 %v928
        %938 = vmatprep.subr.bf16.mxu0 0
        %939 = vmatpush1.bf16.msra.mxu0 0
        %940 = vmatprep.subr.bf16.mxu0 0
        %941 = vmatpush1.bf16.msra.mxu0 0
        %942 = vmatprep.subr.bf16.mxu0 0
        %943 = vmatpush1.bf16.msra.mxu0 0
        %944 = vmatprep.subr.bf16.mxu0 0
        %945 = vmatpush1.bf16.msra.mxu0 0
        %946 = vmatprep.subr.bf16.mxu0 0
        %947 = vmatpush1.bf16.msra.mxu0 0
        %948 = vmatprep.subr.bf16.mxu0 0
        %949 = vmatpush1.bf16.msra.mxu0 0
        %950 = vmatprep.subr.bf16.mxu0 0
        %951 = vmatpush1.bf16.msra.mxu0 0
        %952 = vmatprep.subr.bf16.mxu0 0
        %953 = vmatpush1.bf16.msra.mxu0 0
        %954 = vmatprep.subr.bf16.mxu0 0
        %955 = vmatpush1.bf16.msra.mxu0 0
        %956 = vmatprep.subr.bf16.mxu0 0
        %957 = vmatpush1.bf16.msra.mxu0 0
        %958 = vmatprep.subr.bf16.mxu0 0
        %959 = vmatpush1.bf16.msra.mxu0 0
        %960 = vmatprep.subr.bf16.mxu0 0
        %961 = vmatpush1.bf16.msra.mxu0 0
        %962 = vmatprep.subr.bf16.mxu0 0
        %963 = vmatpush1.bf16.msra.mxu0 0
        %964 = vmatprep.subr.bf16.mxu0 0
        %965 = vmatpush1.bf16.msra.mxu0 0
        %966 = vmatprep.mubr.bf16.mxu0 0
        %967 = vmatmul.mubr.bf16.gmra.mrb[0].mxu0 %v932
        %v968 = vpop.f32.mrb[0].mxu0
        %v969 = vadd.f32 0.0, %v968
        %v970 = vpop.f32.mrb[0].mxu0
        %v971 = vpop.f32.mrb[0].mxu0
        %v972 = vpop.f32.mrb[0].mxu0
        %973 = vdwg.mxu0
        %v974 = vadd.f32 %v801, %v969
        %v975 = vsel %vm806, %v974, 0.0
        %976 = vadd.xlane.f32.xlu0 %v975
        %v977 = vpop.xlane.xlu0 %976
        %v978 = vmul.f32 %v977, %v810
        %v979 = vsub.f32 %v974, %v978
        %v980 = vmul.f32 %v979, %v979
        %v981 = vsel %vm806, %v980, 0.0
        %982 = vadd.xlane.f32.xlu0 %v981
        %v983 = vpop.xlane.xlu0 %982
        %v984 = vmul.f32 %v983, %v810
        %v985 = vadd.f32 %v984, 1e-06
        %v986 = vrsqrt.pop %v985
        %v987 = vmul.f32 %v979, %v986
        %v988 = vlaneseq
        %v989 = vshrl.u32 %v988, 7
        %v990 = vsub.s32 1, %v989
        %v991 = vrot.slane %v804, %v990
        %v992 = vmul.f32 %v987, %v991
        %v993 = vlaneseq
        %v994 = vshrl.u32 %v993, 7
        %v995 = vsub.s32 1, %v994
        %v996 = vrot.slane %v805, %v995
        %v997 = vadd.f32 %v992, %v996
        %v998 = vld [vmem:[%s769] sm:$0xf]
        %v999 = vld [vmem:[%s769 + $0x4] sm:$0xf]
        %v1000 = vld [vmem:[%s769 + $0x8] sm:$0xf]
        %v1001 = vld [vmem:[%s769 + $0xc] sm:$0xf]
        %v1002 = vpack.c.bf16 %v997, %v997
        %v1007 = vunpack.c.l.b16 %v998
        %v1008 = vunpack.c.l.b16 %v999
        %v1009 = vunpack.c.l.b16 %v1000
        %v1010 = vunpack.c.l.b16 %v1001
        %v1011 = vpack.c.b16 %v1008, %v1007
        %v1012 = vpack.c.b16 %v1010, %v1009
        %v1016 = vsel %vm848, %v1002, 0
        %1018 = vmatprep.subr.bf16.mxu0 0
        %1019 = vmatpush1.bf16.msra.mxu0 %v1011
        %1020 = vmatprep.subr.bf16.mxu0 0
        %1021 = vmatpush1.bf16.msra.mxu0 %v1012
        %1022 = vmatprep.subr.bf16.mxu0 0
        %1023 = vmatpush1.bf16.msra.mxu0 0
        %1024 = vmatprep.subr.bf16.mxu0 0
        %1025 = vmatpush1.bf16.msra.mxu0 0
        %1026 = vmatprep.subr.bf16.mxu0 0
        %1027 = vmatpush1.bf16.msra.mxu0 0
        %1028 = vmatprep.subr.bf16.mxu0 0
        %1029 = vmatpush1.bf16.msra.mxu0 0
        %1030 = vmatprep.subr.bf16.mxu0 0
        %1031 = vmatpush1.bf16.msra.mxu0 0
        %1032 = vmatprep.subr.bf16.mxu0 0
        %1033 = vmatpush1.bf16.msra.mxu0 0
        %1034 = vmatprep.subr.bf16.mxu0 0
        %1035 = vmatpush1.bf16.msra.mxu0 0
        %1036 = vmatprep.subr.bf16.mxu0 0
        %1037 = vmatpush1.bf16.msra.mxu0 0
        %1038 = vmatprep.subr.bf16.mxu0 0
        %1039 = vmatpush1.bf16.msra.mxu0 0
        %1040 = vmatprep.subr.bf16.mxu0 0
        %1041 = vmatpush1.bf16.msra.mxu0 0
        %1042 = vmatprep.subr.bf16.mxu0 0
        %1043 = vmatpush1.bf16.msra.mxu0 0
        %1044 = vmatprep.subr.bf16.mxu0 0
        %1045 = vmatpush1.bf16.msra.mxu0 0
        %1046 = vmatprep.subr.bf16.mxu0 0
        %1047 = vmatpush1.bf16.msra.mxu0 0
        %1048 = vmatprep.subr.bf16.mxu0 0
        %1049 = vmatpush1.bf16.msra.mxu0 0
        %1050 = vmatprep.mubr.bf16.mxu0 0
        %1051 = vmatmul.mubr.bf16.gmra.mrb[0].mxu0 %v1016
        %v1052 = vpop.f32.mrb[0].mxu0
        %v1053 = vadd.f32 0.0, %v1052
        %v1054 = vpop.f32.mrb[0].mxu0
        %v1055 = vpop.f32.mrb[0].mxu0
        %v1056 = vpop.f32.mrb[0].mxu0
        %1057 = vdwg.mxu0
        %v1058 = vld [vmem:[%s774] sm:$0xf]
        %v1059 = vld [vmem:[%s774 + $0x4] sm:$0xf]
        %v1060 = vld [vmem:[%s774 + $0x8] sm:$0xf]
        %v1061 = vld [vmem:[%s774 + $0xc] sm:$0xf]
        %v1064 = vunpack.c.l.b16 %v802
        %v1065 = vunpack.c.l.b16 %v803
        %v1066 = vpack.c.b16 %v1065, %v1064
        %v1071 = vunpack.c.l.b16 %v1058
        %v1072 = vunpack.c.l.b16 %v1059
        %v1073 = vunpack.c.l.b16 %v1060
        %v1074 = vunpack.c.l.b16 %v1061
        %v1075 = vpack.c.b16 %v1072, %v1071
        %v1076 = vpack.c.b16 %v1074, %v1073
        %v1080 = vsel %vm848, %v1066, 0
        %1082 = vmatprep.subr.bf16.mxu0 0
        %1083 = vmatpush1.bf16.msra.mxu0 %v1075
        %1084 = vmatprep.subr.bf16.mxu0 0
        %1085 = vmatpush1.bf16.msra.mxu0 %v1076
        %1086 = vmatprep.subr.bf16.mxu0 0
        %1087 = vmatpush1.bf16.msra.mxu0 0
        %1088 = vmatprep.subr.bf16.mxu0 0
        %1089 = vmatpush1.bf16.msra.mxu0 0
        %1090 = vmatprep.subr.bf16.mxu0 0
        %1091 = vmatpush1.bf16.msra.mxu0 0
        %1092 = vmatprep.subr.bf16.mxu0 0
        %1093 = vmatpush1.bf16.msra.mxu0 0
        %1094 = vmatprep.subr.bf16.mxu0 0
        %1095 = vmatpush1.bf16.msra.mxu0 0
        %1096 = vmatprep.subr.bf16.mxu0 0
        %1097 = vmatpush1.bf16.msra.mxu0 0
        %1098 = vmatprep.subr.bf16.mxu0 0
        %1099 = vmatpush1.bf16.msra.mxu0 0
        %1100 = vmatprep.subr.bf16.mxu0 0
        %1101 = vmatpush1.bf16.msra.mxu0 0
        %1102 = vmatprep.subr.bf16.mxu0 0
        %1103 = vmatpush1.bf16.msra.mxu0 0
        %1104 = vmatprep.subr.bf16.mxu0 0
        %1105 = vmatpush1.bf16.msra.mxu0 0
        %1106 = vmatprep.subr.bf16.mxu0 0
        %1107 = vmatpush1.bf16.msra.mxu0 0
        %1108 = vmatprep.subr.bf16.mxu0 0
        %1109 = vmatpush1.bf16.msra.mxu0 0
        %1110 = vmatprep.subr.bf16.mxu0 0
        %1111 = vmatpush1.bf16.msra.mxu0 0
        %1112 = vmatprep.subr.bf16.mxu0 0
        %1113 = vmatpush1.bf16.msra.mxu0 0
        %1114 = vmatprep.mubr.bf16.mxu0 0
        %1115 = vmatmul.mubr.bf16.gmra.mrb[0].mxu0 %v1080
        %v1116 = vpop.f32.mrb[0].mxu0
        %v1117 = vadd.f32 0.0, %v1116
        %v1118 = vpop.f32.mrb[0].mxu0
        %v1119 = vpop.f32.mrb[0].mxu0
        %v1120 = vadd.f32 0.0, %v1119
        %v1121 = vpop.f32.mrb[0].mxu0
        %1122 = vdwg.mxu0
        %v1123 = vpack.c.bf16 %v1120, %v1117
        %v1125 = vunpack.c.l.b16 %v1123
        %v1126 = vunpack.c.h.b16 %v1123
        %v1127 = vpack.c.b16 %v1125, %v1125
        %v1128 = vpack.c.b16 %v1126, %v1126
        %vm1131 = vcmask 519168
        %1132 = vst.msk [vmem:[%s754] sm:$0xf] %vm1131, %v1127
        %1133 = vst.msk [vmem:[%s754 + $0x4] sm:$0xf] %vm1131, %v1128
        %v1136 = vunpack.c.l.s4 1966171168
        %v1137 = vunpack.c.0.s8 %v1136
        %v1138 = vlaneseq
        %v1139 = vshrl.u32 %v1138, 7
        %v1140 = vsub.s32 %v1137, %v1139
        %v1141 = vrot.slane %v1053, %v1140
        %v1142 = vcombine.high %v1141, %v1141
        %v1144 = vunpack.c.l.s4 1966171168
        %v1145 = vunpack.c.0.s8 %v1144
        %v1146 = vlaneseq
        %v1147 = vshrl.u32 %v1146, 7
        %v1148 = vsub.s32 %v1145, %v1147
        %v1149 = vrot.slane %v1141, %v1148
        %v1151 = vunpack.c.l.s4 1966171168
        %v1152 = vunpack.c.0.s8 %v1151
        %v1153 = vlaneseq
        %v1154 = vshrl.u32 %v1153, 7
        %v1155 = vsub.s32 %v1152, %v1154
        %v1156 = vrot.slane %v1142, %v1155
        %v1157 = vlaneseq
        %v1158 = vshrl.u32 %v1157, 7
        %v1159 = vsub.s32 0, %v1158
        %v1160 = vrot.slane %v1149, %v1159
        %v1161 = vlaneseq
        %v1162 = vshrl.u32 %v1161, 7
        %v1163 = vsub.s32 0, %v1162
        %v1164 = vrot.slane %v1156, %v1163
        %v1167 = vmul.f32 %v1160, %v1117
        %v1168 = vmul.f32 %v1164, %v1120
        %v1169 = vld [vmem:[%s3] sm:$0xff]
        %v1170 = vld [vmem:[%s3 + $0x8] sm:$0xff]
        %v1171 = vld [vmem:[%s3 + $0x10] sm:$0xff]
        %v1172 = vld [vmem:[%s3 + $0x18] sm:$0xff]
        %v1174 = vsel %vm848, %v1167, 0
        %v1177 = vsel %vm848, %v1168, 0
        %1179 = vmatprep.subr.mxu0 0.0
        %1180 = vmatpush1.msra.mxu0 %v1169
        %1181 = vmatprep.subr.mxu0 0.0
        %1182 = vmatpush1.msra.mxu0 %v1170
        %1183 = vmatprep.subr.mxu0 0.0
        %1184 = vmatpush1.msra.mxu0 %v1171
        %1185 = vmatprep.subr.mxu0 0.0
        %1186 = vmatpush1.msra.mxu0 %v1172
        %1187 = vmatprep.subr.mxu0 0.0
        %1188 = vmatpush1.msra.mxu0 0.0
        %1189 = vmatprep.subr.mxu0 0.0
        %1190 = vmatpush1.msra.mxu0 0.0
        %1191 = vmatprep.subr.mxu0 0.0
        %1192 = vmatpush1.msra.mxu0 0.0
        %1193 = vmatprep.subr.mxu0 0.0
        %1194 = vmatpush1.msra.mxu0 0.0
        %1195 = vmatprep.subr.mxu0 0.0
        %1196 = vmatpush1.msra.mxu0 0.0
        %1197 = vmatprep.subr.mxu0 0.0
        %1198 = vmatpush1.msra.mxu0 0.0
        %1199 = vmatprep.subr.mxu0 0.0
        %1200 = vmatpush1.msra.mxu0 0.0
        %1201 = vmatprep.subr.mxu0 0.0
        %1202 = vmatpush1.msra.mxu0 0.0
        %1203 = vmatprep.subr.mxu0 0.0
        %1204 = vmatpush1.msra.mxu0 0.0
        %1205 = vmatprep.subr.mxu0 0.0
        %1206 = vmatpush1.msra.mxu0 0.0
        %1207 = vmatprep.subr.mxu0 0.0
        %1208 = vmatpush1.msra.mxu0 0.0
        %1209 = vmatprep.subr.mxu0 0.0
        %1210 = vmatpush1.msra.mxu0 0.0
        %1211 = vmatprep.subr.mxu0 0.0
        %1212 = vmatpush1.msra.mxu0 0.0
        %1213 = vmatprep.subr.mxu0 0.0
        %1214 = vmatpush1.msra.mxu0 0.0
        %1215 = vmatprep.subr.mxu0 0.0
        %1216 = vmatpush1.msra.mxu0 0.0
        %1217 = vmatprep.subr.mxu0 0.0
        %1218 = vmatpush1.msra.mxu0 0.0
        %1219 = vmatprep.subr.mxu0 0.0
        %1220 = vmatpush1.msra.mxu0 0.0
        %1221 = vmatprep.subr.mxu0 0.0
        %1222 = vmatpush1.msra.mxu0 0.0
        %1223 = vmatprep.subr.mxu0 0.0
        %1224 = vmatpush1.msra.mxu0 0.0
        %1225 = vmatprep.subr.mxu0 0.0
        %1226 = vmatpush1.msra.mxu0 0.0
        %1227 = vmatprep.subr.mxu0 0.0
        %1228 = vmatpush1.msra.mxu0 0.0
        %1229 = vmatprep.subr.mxu0 0.0
        %1230 = vmatpush1.msra.mxu0 0.0
        %1231 = vmatprep.subr.mxu0 0.0
        %1232 = vmatpush1.msra.mxu0 0.0
        %1233 = vmatprep.subr.mxu0 0.0
        %1234 = vmatpush1.msra.mxu0 0.0
        %1235 = vmatprep.subr.mxu0 0.0
        %1236 = vmatpush1.msra.mxu0 0.0
        %1237 = vmatprep.subr.mxu0 0.0
        %1238 = vmatpush1.msra.mxu0 0.0
        %1239 = vmatprep.subr.mxu0 0.0
        %1240 = vmatpush1.msra.mxu0 0.0
        %1241 = vmatprep.subr.mxu0 0.0
        %1242 = vmatpush1.msra.mxu0 0.0
        %1243 = vmatprep.mubr.f32.mxu0 0.0
        %1244 = vmatmul.mubr.f32.gmra.mrb[0].mxu0 %v1174
        %v1245 = vpop.f32.mrb[0].mxu0
        %v1246 = vadd.f32 0.0, %v1245
        %v1247 = vpop.f32.mrb[0].mxu0
        %1248 = vmatprep.mubr.f32.mxu0 0.0
        %1249 = vmatmul.mubr.f32.gmra.mrb[0].mxu0 %v1177
        %v1250 = vpop.f32.mrb[0].mxu0
        %v1251 = vadd.f32 0.0, %v1250
        %v1252 = vpop.f32.mrb[0].mxu0
        %1253 = vdwg.mxu0
        %v1254 = vmul.f32 %v1246, 0.35355338
        %v1255 = vmul.f32 %v1251, 0.35355338
        %v1256 = vld [vmem:[%s2] sm:$0xff]
        %v1257 = vld [vmem:[%s2 + $0x8] sm:$0xff]
        %1259 = vset.pattern.permute.xlu0 0
        %1260 = vperm.xlu0 %1259, %v1256
        %v1261 = vpop.permute.xlu0 %1260
        %1264 = vset.pattern.permute.xlu0 0
        %1265 = vperm.xlu0 %1264, %v1257
        %v1266 = vpop.permute.xlu0 %1265
        %v1268 = vadd.f32 %v1254, %v1261
        %v1269 = vadd.f32 %v1255, %v1266
        %vm1270 = vcmask 31744
        %v1271 = vsel %vm1270, %v1268, -inf
        %v1272 = vrot.slane %v1271, 4
        %v1273 = vmax.f32 %v1271, %v1272
        %v1274 = vrot.slane %v1273, 2
        %v1275 = vmax.f32 %v1273, %v1274
        %v1276 = vrot.slane %v1275, 1
        %v1277 = vmax.f32 %v1275, %v1276
        %v1278 = vsel %vm1270, %v1269, -inf
        %v1279 = vrot.slane %v1278, 4
        %v1280 = vmax.f32 %v1278, %v1279
        %v1281 = vrot.slane %v1280, 2
        %v1282 = vmax.f32 %v1280, %v1281
        %v1283 = vrot.slane %v1282, 1
        %v1284 = vmax.f32 %v1282, %v1283
        %v1285 = vsub.f32 %v1268, %v1277
        %v1286 = vsub.f32 %v1269, %v1284
        %v1287 = vmul.f32 %v1285, 1.442695
        %v1288 = vpow.pop %v1287
        %v1289 = vmul.f32 %v1286, 1.442695
        %v1290 = vpow.pop %v1289
        %v1291 = vsel %vm1270, %v1288, 0.0
        %v1292 = vrot.slane %v1291, 4
        %v1293 = vadd.f32 %v1291, %v1292
        %v1294 = vrot.slane %v1293, 2
        %v1295 = vadd.f32 %v1293, %v1294
        %v1296 = vrot.slane %v1295, 1
        %v1297 = vadd.f32 %v1295, %v1296
        %v1298 = vsel %vm1270, %v1290, 0.0
        %v1299 = vrot.slane %v1298, 4
        %v1300 = vadd.f32 %v1298, %v1299
        %v1301 = vrot.slane %v1300, 2
        %v1302 = vadd.f32 %v1300, %v1301
        %v1303 = vrot.slane %v1302, 1
        %v1304 = vadd.f32 %v1302, %v1303
        %v1305 = vrcp.pop %v1297
        %v1306 = vrcp.pop %v1304
        %v1307 = vmul.f32 %v1288, %v1305
        %v1308 = vmul.f32 %v1290, %v1306
        %v1309 = vld [vmem:[#allocation8] sm:$0xf]
        %v1311 = vsel %vm1270, %v1307, 0
        %v1314 = vsel %vm1270, %v1308, 0
        %vm1316 = vcmask 1043456
        %v1318 = vsel %vm1316, %v1309, 0
        %1320 = vmatprep.subr.mxu0 0.0
        %1321 = vmatpush1.msra.mxu0 %v1318
        %1322 = vmatprep.subr.mxu0 0.0
        %1323 = vmatpush1.msra.mxu0 0.0
        %1324 = vmatprep.subr.mxu0 0.0
        %1325 = vmatpush1.msra.mxu0 0.0
        %1326 = vmatprep.subr.mxu0 0.0
        %1327 = vmatpush1.msra.mxu0 0.0
        %1328 = vmatprep.subr.mxu0 0.0
        %1329 = vmatpush1.msra.mxu0 0.0
        %1330 = vmatprep.subr.mxu0 0.0
        %1331 = vmatpush1.msra.mxu0 0.0
        %1332 = vmatprep.subr.mxu0 0.0
        %1333 = vmatpush1.msra.mxu0 0.0
        %1334 = vmatprep.subr.mxu0 0.0
        %1335 = vmatpush1.msra.mxu0 0.0
        %1336 = vmatprep.subr.mxu0 0.0
        %1337 = vmatpush1.msra.mxu0 0.0
        %1338 = vmatprep.subr.mxu0 0.0
        %1339 = vmatpush1.msra.mxu0 0.0
        %1340 = vmatprep.subr.mxu0 0.0
        %1341 = vmatpush1.msra.mxu0 0.0
        %1342 = vmatprep.subr.mxu0 0.0
        %1343 = vmatpush1.msra.mxu0 0.0
        %1344 = vmatprep.subr.mxu0 0.0
        %1345 = vmatpush1.msra.mxu0 0.0
        %1346 = vmatprep.subr.mxu0 0.0
        %1347 = vmatpush1.msra.mxu0 0.0
        %1348 = vmatprep.subr.mxu0 0.0
        %1349 = vmatpush1.msra.mxu0 0.0
        %1350 = vmatprep.subr.mxu0 0.0
        %1351 = vmatpush1.msra.mxu0 0.0
        %1352 = vmatprep.subr.mxu0 0.0
        %1353 = vmatpush1.msra.mxu0 0.0
        %1354 = vmatprep.subr.mxu0 0.0
        %1355 = vmatpush1.msra.mxu0 0.0
        %1356 = vmatprep.subr.mxu0 0.0
        %1357 = vmatpush1.msra.mxu0 0.0
        %1358 = vmatprep.subr.mxu0 0.0
        %1359 = vmatpush1.msra.mxu0 0.0
        %1360 = vmatprep.subr.mxu0 0.0
        %1361 = vmatpush1.msra.mxu0 0.0
        %1362 = vmatprep.subr.mxu0 0.0
        %1363 = vmatpush1.msra.mxu0 0.0
        %1364 = vmatprep.subr.mxu0 0.0
        %1365 = vmatpush1.msra.mxu0 0.0
        %1366 = vmatprep.subr.mxu0 0.0
        %1367 = vmatpush1.msra.mxu0 0.0
        %1368 = vmatprep.subr.mxu0 0.0
        %1369 = vmatpush1.msra.mxu0 0.0
        %1370 = vmatprep.subr.mxu0 0.0
        %1371 = vmatpush1.msra.mxu0 0.0
        %1372 = vmatprep.subr.mxu0 0.0
        %1373 = vmatpush1.msra.mxu0 0.0
        %1374 = vmatprep.subr.mxu0 0.0
        %1375 = vmatpush1.msra.mxu0 0.0
        %1376 = vmatprep.subr.mxu0 0.0
        %1377 = vmatpush1.msra.mxu0 0.0
        %1378 = vmatprep.subr.mxu0 0.0
        %1379 = vmatpush1.msra.mxu0 0.0
        %1380 = vmatprep.subr.mxu0 0.0
        %1381 = vmatpush1.msra.mxu0 0.0
        %1382 = vmatprep.subr.mxu0 0.0
        %1383 = vmatpush1.msra.mxu0 0.0
        %1384 = vmatprep.mubr.f32.mxu0 0.0
        %1385 = vmatmul.mubr.f32.gmra.mrb[0].mxu0 %v1311
        %v1386 = vpop.f32.mrb[0].mxu0
        %v1387 = vadd.f32 0.0, %v1386
        %v1388 = vpop.f32.mrb[0].mxu0
        %1389 = vmatprep.mubr.f32.mxu0 0.0
        %1390 = vmatmul.mubr.f32.gmra.mrb[0].mxu0 %v1314
        %v1391 = vpop.f32.mrb[0].mxu0
        %v1392 = vadd.f32 0.0, %v1391
        %v1393 = vpop.f32.mrb[0].mxu0
        %1394 = vdwg.mxu0
        %1397 = vrot.lane.b32.xlu0 %v1117, 96
        %v1398 = vpop.permute.xlu0 %1397
        %1399 = vrot.lane.b32.xlu0 %v1120, 96
        %v1400 = vpop.permute.xlu0 %1399
        %v1403 = vmul.f32 %v1387, %v1398
        %v1404 = vmul.f32 %v1392, %v1400
        %v1405 = vsel %vm848, %v1403, 0.0
        %v1406 = vrot.slane %v1405, 4
        %v1407 = vadd.f32 %v1405, %v1406
        %v1408 = vrot.slane %v1407, 2
        %v1409 = vadd.f32 %v1407, %v1408
        %v1410 = vrot.slane %v1409, 1
        %v1411 = vadd.f32 %v1409, %v1410
        %v1412 = vsel %vm848, %v1404, 0.0
        %v1413 = vrot.slane %v1412, 4
        %v1414 = vadd.f32 %v1412, %v1413
        %v1415 = vrot.slane %v1414, 2
        %v1416 = vadd.f32 %v1414, %v1415
        %v1417 = vrot.slane %v1416, 1
        %v1418 = vadd.f32 %v1416, %v1417
        %v1419 = vld [vmem:[%s779] sm:$0xf]
        %v1420 = vld [vmem:[%s779 + $0x4] sm:$0xf]
        %v1421 = vld [vmem:[%s779 + $0x8] sm:$0xf]
        %v1422 = vld [vmem:[%s779 + $0xc] sm:$0xf]
        %v1423 = vpack.c.bf16 %v1411, %v1411
        %v1424 = vpack.c.bf16 %v1418, %v1418
        %v1427 = vunpack.c.l.b16 %v1423
        %v1428 = vunpack.c.l.b16 %v1424
        %vm1429 = vcmask 1041409
        %v1430 = vsel %vm1429, %v1428, %v1427
        %v1431 = vpack.c.b16 %v1430, %v1430
        %v1436 = vunpack.c.l.b16 %v1419
        %v1437 = vunpack.c.l.b16 %v1420
        %v1438 = vunpack.c.l.b16 %v1421
        %v1439 = vunpack.c.l.b16 %v1422
        %v1440 = vpack.c.b16 %v1437, %v1436
        %v1441 = vpack.c.b16 %v1439, %v1438
        %v1445 = vsel %vm848, %v1431, 0
        %1447 = vmatprep.subr.bf16.mxu0 0
        %1448 = vmatpush1.bf16.msra.mxu0 %v1440
        %1449 = vmatprep.subr.bf16.mxu0 0
        %1450 = vmatpush1.bf16.msra.mxu0 %v1441
        %1451 = vmatprep.subr.bf16.mxu0 0
        %1452 = vmatpush1.bf16.msra.mxu0 0
        %1453 = vmatprep.subr.bf16.mxu0 0
        %1454 = vmatpush1.bf16.msra.mxu0 0
        %1455 = vmatprep.subr.bf16.mxu0 0
        %1456 = vmatpush1.bf16.msra.mxu0 0
        %1457 = vmatprep.subr.bf16.mxu0 0
        %1458 = vmatpush1.bf16.msra.mxu0 0
        %1459 = vmatprep.subr.bf16.mxu0 0
        %1460 = vmatpush1.bf16.msra.mxu0 0
        %1461 = vmatprep.subr.bf16.mxu0 0
        %1462 = vmatpush1.bf16.msra.mxu0 0
        %1463 = vmatprep.subr.bf16.mxu0 0
        %1464 = vmatpush1.bf16.msra.mxu0 0
        %1465 = vmatprep.subr.bf16.mxu0 0
        %1466 = vmatpush1.bf16.msra.mxu0 0
        %1467 = vmatprep.subr.bf16.mxu0 0
        %1468 = vmatpush1.bf16.msra.mxu0 0
        %1469 = vmatprep.subr.bf16.mxu0 0
        %1470 = vmatpush1.bf16.msra.mxu0 0
        %1471 = vmatprep.subr.bf16.mxu0 0
        %1472 = vmatpush1.bf16.msra.mxu0 0
        %1473 = vmatprep.subr.bf16.mxu0 0
        %1474 = vmatpush1.bf16.msra.mxu0 0
        %1475 = vmatprep.subr.bf16.mxu0 0
        %1476 = vmatpush1.bf16.msra.mxu0 0
        %1477 = vmatprep.subr.bf16.mxu0 0
        %1478 = vmatpush1.bf16.msra.mxu0 0
        %1479 = vmatprep.mubr.bf16.mxu0 0
        %1480 = vmatmul.mubr.bf16.gmra.mrb[0].mxu0 %v1445
        %v1481 = vpop.f32.mrb[0].mxu0
        %v1482 = vadd.f32 0.0, %v1481
        %v1483 = vpop.f32.mrb[0].mxu0
        %v1484 = vpop.f32.mrb[0].mxu0
        %v1485 = vpop.f32.mrb[0].mxu0
        %1486 = vdwg.mxu0
        %v1487 = vadd.f32 %v974, %v1482
        %v1488 = vsel %vm806, %v1487, 0.0
        %1489 = vadd.xlane.f32.xlu0 %v1488
        %v1490 = vpop.xlane.xlu0 %1489
        %v1491 = vmul.f32 %v1490, %v810
        %v1492 = vsub.f32 %v1487, %v1491
        %v1493 = vmul.f32 %v1492, %v1492
        %v1494 = vsel %vm806, %v1493, 0.0
        %1495 = vadd.xlane.f32.xlu0 %v1494
        %v1496 = vpop.xlane.xlu0 %1495
        %v1497 = vmul.f32 %v1496, %v810
        %v1498 = vadd.f32 %v1497, 1e-06
        %v1499 = vrsqrt.pop %v1498
        %v1500 = vmul.f32 %v1492, %v1499
        %v1501 = vlaneseq
        %v1502 = vshrl.u32 %v1501, 7
        %v1503 = vsub.s32 2, %v1502
        %v1504 = vrot.slane %v804, %v1503
        %v1505 = vmul.f32 %v1500, %v1504
        %v1506 = vlaneseq
        %v1507 = vshrl.u32 %v1506, 7
        %v1508 = vsub.s32 2, %v1507
        %v1509 = vrot.slane %v805, %v1508
        %v1510 = vadd.f32 %v1505, %v1509
        %v1511 = vld [vmem:[%s660] sm:$0xf]
        %v1512 = vld [vmem:[%s660 + $0x4] sm:$0xf]
        %v1513 = vld [vmem:[%s660 + $0x8] sm:$0xf]
        %v1514 = vld [vmem:[%s660 + $0xc] sm:$0xf]
        %v1515 = vpack.c.bf16 %v1510, %v1510
        %v1520 = vunpack.c.l.b16 %v1511
        %v1521 = vunpack.c.l.b16 %v1512
        %v1522 = vunpack.c.l.b16 %v1513
        %v1523 = vunpack.c.l.b16 %v1514
        %v1524 = vpack.c.b16 %v1521, %v1520
        %v1525 = vpack.c.b16 %v1523, %v1522
        %v1529 = vsel %vm848, %v1515, 0
        %1531 = vmatprep.subr.bf16.mxu0 0
        %1532 = vmatpush1.bf16.msra.mxu0 %v1524
        %1533 = vmatprep.subr.bf16.mxu0 0
        %1534 = vmatpush1.bf16.msra.mxu0 %v1525
        %1535 = vmatprep.subr.bf16.mxu0 0
        %1536 = vmatpush1.bf16.msra.mxu0 0
        %1537 = vmatprep.subr.bf16.mxu0 0
        %1538 = vmatpush1.bf16.msra.mxu0 0
        %1539 = vmatprep.subr.bf16.mxu0 0
        %1540 = vmatpush1.bf16.msra.mxu0 0
        %1541 = vmatprep.subr.bf16.mxu0 0
        %1542 = vmatpush1.bf16.msra.mxu0 0
        %1543 = vmatprep.subr.bf16.mxu0 0
        %1544 = vmatpush1.bf16.msra.mxu0 0
        %1545 = vmatprep.subr.bf16.mxu0 0
        %1546 = vmatpush1.bf16.msra.mxu0 0
        %1547 = vmatprep.subr.bf16.mxu0 0
        %1548 = vmatpush1.bf16.msra.mxu0 0
        %1549 = vmatprep.subr.bf16.mxu0 0
        %1550 = vmatpush1.bf16.msra.mxu0 0
        %1551 = vmatprep.subr.bf16.mxu0 0
        %1552 = vmatpush1.bf16.msra.mxu0 0
        %1553 = vmatprep.subr.bf16.mxu0 0
        %1554 = vmatpush1.bf16.msra.mxu0 0
        %1555 = vmatprep.subr.bf16.mxu0 0
        %1556 = vmatpush1.bf16.msra.mxu0 0
        %1557 = vmatprep.subr.bf16.mxu0 0
        %1558 = vmatpush1.bf16.msra.mxu0 0
        %1559 = vmatprep.subr.bf16.mxu0 0
        %1560 = vmatpush1.bf16.msra.mxu0 0
        %1561 = vmatprep.subr.bf16.mxu0 0
        %1562 = vmatpush1.bf16.msra.mxu0 0
        %1563 = vmatprep.mubr.bf16.mxu0 0
        %1564 = vmatmul.mubr.bf16.gmra.mrb[0].mxu0 %v1529
        %v1565 = vpop.f32.mrb[0].mxu0
        %v1566 = vadd.f32 0.0, %v1565
        %v1567 = vpop.f32.mrb[0].mxu0
        %v1568 = vpop.f32.mrb[0].mxu0
        %v1569 = vpop.f32.mrb[0].mxu0
        %1570 = vdwg.mxu0
        %v1571 = vmax.f32 %v1566, 0.0
        %v1572 = vld [vmem:[%s784] sm:$0xf]
        %v1573 = vld [vmem:[%s784 + $0x4] sm:$0xf]
        %v1574 = vld [vmem:[%s784 + $0x8] sm:$0xf]
        %v1575 = vld [vmem:[%s784 + $0xc] sm:$0xf]
        %v1576 = vld [vmem:[%s784 + $0x10] sm:$0xf]
        %v1577 = vld [vmem:[%s784 + $0x14] sm:$0xf]
        %v1578 = vld [vmem:[%s784 + $0x18] sm:$0xf]
        %v1579 = vld [vmem:[%s784 + $0x1c] sm:$0xf]
        %v1580 = vpack.c.bf16 %v1571, %v1571
        %v1589 = vunpack.c.l.b16 %v1572
        %v1590 = vunpack.c.l.b16 %v1573
        %v1591 = vunpack.c.l.b16 %v1574
        %v1592 = vunpack.c.l.b16 %v1575
        %v1593 = vunpack.c.l.b16 %v1576
        %v1594 = vunpack.c.l.b16 %v1577
        %v1595 = vunpack.c.l.b16 %v1578
        %v1596 = vunpack.c.l.b16 %v1579
        %v1597 = vpack.c.b16 %v1590, %v1589
        %v1598 = vpack.c.b16 %v1592, %v1591
        %v1599 = vpack.c.b16 %v1594, %v1593
        %v1600 = vpack.c.b16 %v1596, %v1595
        %vm1605 = vcmask 523264
        %v1607 = vsel %vm1605, %v1580, 0
        %1609 = vmatprep.subr.bf16.mxu0 0
        %1610 = vmatpush1.bf16.msra.mxu0 %v1597
        %1611 = vmatprep.subr.bf16.mxu0 0
        %1612 = vmatpush1.bf16.msra.mxu0 %v1598
        %1613 = vmatprep.subr.bf16.mxu0 0
        %1614 = vmatpush1.bf16.msra.mxu0 %v1599
        %1615 = vmatprep.subr.bf16.mxu0 0
        %1616 = vmatpush1.bf16.msra.mxu0 %v1600
        %1617 = vmatprep.subr.bf16.mxu0 0
        %1618 = vmatpush1.bf16.msra.mxu0 0
        %1619 = vmatprep.subr.bf16.mxu0 0
        %1620 = vmatpush1.bf16.msra.mxu0 0
        %1621 = vmatprep.subr.bf16.mxu0 0
        %1622 = vmatpush1.bf16.msra.mxu0 0
        %1623 = vmatprep.subr.bf16.mxu0 0
        %1624 = vmatpush1.bf16.msra.mxu0 0
        %1625 = vmatprep.subr.bf16.mxu0 0
        %1626 = vmatpush1.bf16.msra.mxu0 0
        %1627 = vmatprep.subr.bf16.mxu0 0
        %1628 = vmatpush1.bf16.msra.mxu0 0
        %1629 = vmatprep.subr.bf16.mxu0 0
        %1630 = vmatpush1.bf16.msra.mxu0 0
        %1631 = vmatprep.subr.bf16.mxu0 0
        %1632 = vmatpush1.bf16.msra.mxu0 0
        %1633 = vmatprep.subr.bf16.mxu0 0
        %1634 = vmatpush1.bf16.msra.mxu0 0
        %1635 = vmatprep.subr.bf16.mxu0 0
        %1636 = vmatpush1.bf16.msra.mxu0 0
        %1637 = vmatprep.subr.bf16.mxu0 0
        %1638 = vmatpush1.bf16.msra.mxu0 0
        %1639 = vmatprep.subr.bf16.mxu0 0
        %1640 = vmatpush1.bf16.msra.mxu0 0
        %1641 = vmatprep.mubr.bf16.mxu0 0
        %1642 = vmatmul.mubr.bf16.gmra.mrb[0].mxu0 %v1607
        %v1643 = vpop.f32.mrb[0].mxu0
        %v1644 = vadd.f32 0.0, %v1643
        %v1645 = vpop.f32.mrb[0].mxu0
        %v1646 = vpop.f32.mrb[0].mxu0
        %v1647 = vpop.f32.mrb[0].mxu0
        %1648 = vdwg.mxu0
        %v1649 = vadd.f32 %v1487, %v1644
        %1650 = vst.msk [vmem:[#allocation2] sm:$0x3] %vm806, %v1649
        %p1651 = scmp.eq.s32.totalorder %s39, 1
        // Predicated region
        $region105: #{tpu_custom_call.1} parent=83 // pred_check
          %p1652 = pneg %p1651
        $region106: #{tpu_custom_call.1} parent=83 // pred_check_branch
          %1654 = sbr.rel (%p1652) target = $region108
        $region107: #{tpu_custom_call.1} parent=83 // pred_region
          %v1655 = vld [vmem:[%s14] sm:$0x1]
          %v1656 = vld [vmem:[%s15] sm:$0x1]
          %v1657 = vsel %vm806, %v1649, 0.0
          %1658 = vadd.xlane.f32.xlu0 %v1657
          %v1659 = vpop.xlane.xlu0 %1658
          %v1660 = vmul.f32 %v1659, %v810
          %v1661 = vsub.f32 %v1649, %v1660
          %v1662 = vmul.f32 %v1661, %v1661
          %v1663 = vsel %vm806, %v1662, 0.0
          %1664 = vadd.xlane.f32.xlu0 %v1663
          %v1665 = vpop.xlane.xlu0 %1664
          %v1666 = vmul.f32 %v1665, %v810
          %v1667 = vadd.f32 %v1666, 1e-06
          %v1668 = vrsqrt.pop %v1667
          %v1669 = vmul.f32 %v1661, %v1668
          %v1671 = vlaneseq
          %v1672 = vshrl.u32 %v1671, 7
          %v1673 = vsub.s32 0, %v1672
          %v1674 = vrot.slane %v1655, %v1673
          %v1676 = vmul.f32 %v1669, %v1674
          %v1678 = vlaneseq
          %v1679 = vshrl.u32 %v1678, 7
          %v1680 = vsub.s32 0, %v1679
          %v1681 = vrot.slane %v1656, %v1680
          %v1683 = vadd.f32 %v1676, %v1681
          %v1684 = vpack.c.bf16 %v1683, %v1683
          %vm1685 = vcmask 253952
          %1686 = vst.msk [vmem:[#allocation11] sm:$0x1] %vm1685, %v1684
        $region108: #{tpu_custom_call.1} parent=83 // pred_fallthru
          _
        %s1687 = sand.u32 %s39, 1
        %s1688 = scalar_lea.sflag [#allocation13], %s1687
        %s1689 = sand.u32 %s449, 1
        %s1690 = scalar_lea.vmem [#allocation12], %s1689
        %s1691 = sand.u32 %s39, 1
        %s1692 = scalar_lea.sflag [#allocation13], %s1691
        %s1693 = sand.u32 %s475, 1
        %s1694 = smul.addr %s1693, 8
        %s1695 = scalar_lea.vmem [#allocation14], %s1694
        // Predicated region
        $region109: #{tpu_custom_call.1} parent=83 // pred_check
          %p1696 = pneg %p433
        $region110: #{tpu_custom_call.1} parent=83 // pred_check_branch
          %1698 = sbr.rel (%p1696) target = $region112
        $region111: #{tpu_custom_call.1} parent=83 // pred_region
          %s1700 = ssub.s32 16, 16
          %1701 = vsyncadd [#allocation5], %s1700
          %s1703 = sshll.u32 [#allocation11], 4
          %s1704 = int_to_ptr.vmem [resolvable:$true] %s1703
          %1706 = dma.vmem_to_hbm [thread:$0]  %s1704, 16, %s16, [#allocation5]
        $region112: #{tpu_custom_call.1} parent=83 // pred_fallthru
          _
        // Predicated region
        $region113: #{tpu_custom_call.1} parent=83 // pred_check
          %p1707 = pneg %p459
        $region114: #{tpu_custom_call.1} parent=83 // pred_check_branch
          %1709 = sbr.rel (%p1707) target = $region116
        $region115: #{tpu_custom_call.1} parent=83 // pred_region
          %s1711 = ssub.s32 16, 16
          %1712 = vsyncadd %s1688, %s1711
          %s1713 = smul.addr %s39, 16
          %s1714 = scalar_lea.hbm %s17, %s1713
          %s1716 = sshll.u32 %s1690, 4
          %s1717 = int_to_ptr.vmem [resolvable:$true] %s1716
          %1719 = dma.vmem_to_hbm [thread:$0]  %s1717, 16, %s1714, %s1688
        $region116: #{tpu_custom_call.1} parent=83 // pred_fallthru
          _
        // Predicated region
        $region117: #{tpu_custom_call.1} parent=83 // pred_check
          %p1720 = pneg %p485
        $region118: #{tpu_custom_call.1} parent=83 // pred_check_branch
          %1722 = sbr.rel (%p1720) target = $region120
        $region119: #{tpu_custom_call.1} parent=83 // pred_region
          %s1724 = ssub.s32 128, 128
          %1725 = vsyncadd %s1692, %s1724
          %s1726 = smul.addr %s39, 2
          %s1727 = smul.addr %s1726, 64
          %s1728 = scalar_lea.hbm %s18, %s1727
          %s1729 = sshll.u32 %s1695, 4
          %s1730 = int_to_ptr.vmem [resolvable:$true] %s1729
          %1735 = dma.vmem_to_hbm [thread:$0]  %s1730, 128, %s1728, %s1692, 64, 64, 4
        $region120: #{tpu_custom_call.1} parent=83 // pred_fallthru
          _
        // Predicated region
        $region121: #{tpu_custom_call.1} parent=83 // pred_check
          %p1736 = pneg %p433
        $region122: #{tpu_custom_call.1} parent=83 // pred_check_branch
          %1738 = sbr.rel (%p1736) target = $region124
        $region123: #{tpu_custom_call.1} parent=83 // pred_region
          %1739 = dma.done [#allocation5], 16
        $region124: #{tpu_custom_call.1} parent=83 // pred_fallthru
          _
      $region84: #{tpu_custom_call.1} parent=5 // pred_fallthru
        _
      %p1740 = scmp.le.s32.totalorder 2, %s34
      // Predicated region
      $region125: #{tpu_custom_call.1} parent=5 // pred_check
        %p1741 = pneg %p1740
      $region126: #{tpu_custom_call.1} parent=5 // pred_check_branch
        %1743 = sbr.rel (%p1741) target = $region128
      $region127: #{tpu_custom_call.1} parent=5 // pred_region
        %s1744 = ssub.s32 %s34, 2
        // Predicated region
        $region129: #{tpu_custom_call.1} parent=127 // pred_check
          %p1745 = pneg %p465
        $region130: #{tpu_custom_call.1} parent=127 // pred_check_branch
          %1747 = sbr.rel (%p1745) target = $region132
        $region131: #{tpu_custom_call.1} parent=127 // pred_region
          %s1748 = sand.u32 %s40, 1
          %s1749 = scalar_lea.sflag [#allocation13], %s1748
          %s1750 = sand.u32 %s450, 1
          %s1751 = scalar_lea.vmem [#allocation12], %s1750
          %1752 = dma.done %s1749, 16
        $region132: #{tpu_custom_call.1} parent=127 // pred_fallthru
          _
        // Predicated region
        $region133: #{tpu_custom_call.1} parent=127 // pred_check
          %p1753 = pneg %p491
        $region134: #{tpu_custom_call.1} parent=127 // pred_check_branch
          %1755 = sbr.rel (%p1753) target = $region136
        $region135: #{tpu_custom_call.1} parent=127 // pred_region
          %s1756 = sand.u32 %s40, 1
          %s1757 = scalar_lea.sflag [#allocation13], %s1756
          %s1758 = sand.u32 %s476, 1
          %s1759 = smul.addr %s1758, 8
          %s1760 = scalar_lea.vmem [#allocation14], %s1759
          %1761 = dma.done %s1757, 128
        $region136: #{tpu_custom_call.1} parent=127 // pred_fallthru
          _
      $region128: #{tpu_custom_call.1} parent=5 // pred_fallthru
        _
    $region6: #{tpu_custom_call.1} parent=1 // loop_footer
      %s38 = sadd.s32 1, %s34
    $region7: #{tpu_custom_call.1} parent=1 // loop_footer_branch
      %33 = sbr.rel target = $region3
    $region8: #{tpu_custom_call.1} parent=1 // loop_exit
      _
    %1762 = vsyncpa [#allocation4], 1
    %s1763 = scalar_lea.sflag [#allocation4], 1
    %1764 = vsyncpa %s1763, 1
    %1765 = vsyncpa [#allocation7], 1
    %1766 = vsyncpa [#allocation10], 1
    %s1767 = scalar_lea.sflag [#allocation10], 1
    %1768 = vsyncpa %s1767, 1
    %1769 = vsyncpa [#allocation5], 1
    %s1770 = scalar_lea.sflag [#allocation5], 1
    %1771 = vsyncpa %s1770, 1
    %1772 = vsyncpa [#allocation13], 1
    %s1773 = scalar_lea.sflag [#allocation13], 1
    %1774 = vsyncpa %s1773, 1

</llo_original>
